<compile_context>
chip_gen: v7x
topology: tpu7x:2x2x1
jax: 0.10.0
libtpu: 0.0.40
codegen_flags: <defaults>
</compile_context>

<pallas_src>
import functools

import jax
import jax.numpy as jnp
from jax import lax
from jax.experimental import pallas as pl
from jax.experimental.pallas import tpu as pltpu

BN_EPS = 1e-5
VMEM_LIMIT_BYTES = 48 * 1024 * 1024      # comfortably below v7x's 64 MiB physical VMEM
_BLOCK_BYTES_TARGET = 2 * 1024 * 1024    # per-step output-block budget (double-buffered)


def _largest_divisor_leq(n: int, cap: int) -> int:
    cap = max(1, min(n, cap))
    for d in range(cap, 0, -1):
        if n % d == 0:
            return d
    return 1


# --------------------------------------------------------------------------- #
# Kernel 1: transposed conv (parity decomposition, packed weights) + BN partials
# --------------------------------------------------------------------------- #
def upconv_kernel(x_ref, we_ref, wo_ref, y_ref, stats_ref, *, hb, cout):
    # x_ref    : (1, H+1, W+1, Cin)     bf16  -- full zero-padded input image
    # we_ref   : (4*Cin, 2*Cout)        bf16  -- packed weights, even output rows
    # wo_ref   : (4*Cin, 2*Cout)        bf16  -- packed weights, odd output rows
    # y_ref    : (1, HB, 2, W, 2*Cout)  f32   -- [row-parity][col-parity|Cout] packed
    # stats_ref: (1, 1, 2, Cout)        f32   -- per-block [sum, sum_sq] per channel
    blk = pl.program_id(1)
    row0 = pl.multiple_of(blk * hb, hb)

    # Row window (with one halo row) of the padded image; shifted views built once.
    xb = x_ref[0, pl.ds(row0, hb + 1), :, :]           # (HB+1, W+1, Cin)
    w = xb.shape[1] - 1
    xl = xb[:, :w, :]                                  # columns n
    xr = xb[:, 1:, :]                                  # columns n+1 (single sublane shift)
    # lane-concat [x00 | x01 | x10 | x11] -> (HB, W, 4*Cin)
    x_cat = jnp.concatenate([xl[:hb], xr[:hb], xl[1:], xr[1:]], axis=-1)

    # One MXU matmul per output-row parity, K = 4*Cin, f32 accumulation.
    y_even = jnp.einsum("hwc,cd->hwd", x_cat, we_ref[...],
                        preferred_element_type=jnp.float32)   # (HB, W, 2*Cout)
    y_odd = jnp.einsum("hwc,cd->hwd", x_cat, wo_ref[...],
                       preferred_element_type=jnp.float32)

    # Lane-dense (2*Cout wide) stores; parity interleave is now a free reshape outside.
    y_ref[0, :, 0, :, :] = y_even
    y_ref[0, :, 1, :, :] = y_odd

    # BN partial statistics (per Cout channel), single pass, f32 accumulators.
    s_lane = (jnp.sum(y_even, axis=(0, 1), keepdims=True)
              + jnp.sum(y_odd, axis=(0, 1), keepdims=True))          # (1, 1, 2*Cout)
    q_lane = (jnp.sum(y_even * y_even, axis=(0, 1), keepdims=True)
              + jnp.sum(y_odd * y_odd, axis=(0, 1), keepdims=True))
    stats_ref[0, 0, 0:1, :] = s_lane[0, :, :cout] + s_lane[0, :, cout:]
    stats_ref[0, 0, 1:2, :] = q_lane[0, :, :cout] + q_lane[0, :, cout:]


# --------------------------------------------------------------------------- #
# Kernel 2: elementwise BN normalize (precomputed scale/bias) + ReLU, tiled.
# --------------------------------------------------------------------------- #
def bn_relu_kernel(y_ref, scale_ref, bias_ref, out_ref):
    out_ref[...] = jnp.maximum(y_ref[...] * scale_ref[...] + bias_ref[...], 0.0)


def _pack_weights(weight):
    """Pack ConvTranspose2d weight (Cin, Cout, 3, 3) into two (4*Cin, 2*Cout) slabs.

    y[2m  ,2n  ] = x[m,n]  @w[1,1]
    y[2m  ,2n+1] = x[m,n]  @w[1,2] + x[m,n+1]  @w[1,0]
    y[2m+1,2n  ] = x[m,n]  @w[2,1] + x[m+1,n]  @w[0,1]
    y[2m+1,2n+1] = x[m,n]  @w[2,2] + x[m,n+1]  @w[2,0] + x[m+1,n]@w[0,2] + x[m+1,n+1]@w[0,0]
    x_cat lane order: [x00 | x01 | x10 | x11];  output lanes: [col-even | col-odd].
    """
    cin, cout = weight.shape[0], weight.shape[1]
    wk = jnp.transpose(weight, (2, 3, 0, 1)).astype(jnp.float32)   # (3, 3, Cin, Cout)
    z = jnp.zeros((cin, cout), jnp.float32)
    w_even = jnp.concatenate([
        jnp.concatenate([wk[1, 1], wk[1, 2]], axis=1),   # x00 rows
        jnp.concatenate([z,        wk[1, 0]], axis=1),   # x01 rows
        jnp.concatenate([z,        z],        axis=1),   # x10 rows
        jnp.concatenate([z,        z],        axis=1),   # x11 rows
    ], axis=0)
    w_odd = jnp.concatenate([
        jnp.concatenate([wk[2, 1], wk[2, 2]], axis=1),   # x00 rows
        jnp.concatenate([z,        wk[2, 0]], axis=1),   # x01 rows
        jnp.concatenate([wk[0, 1], wk[0, 2]], axis=1),   # x10 rows
        jnp.concatenate([z,        wk[0, 0]], axis=1),   # x11 rows
    ], axis=0)
    return w_even.astype(jnp.bfloat16), w_odd.astype(jnp.bfloat16)


@jax.jit
def upconv_forward(x_nchw, weight, gamma, beta):
    """UpConv forward. x_nchw: (N, Cin, H, W); weight: (Cin, Cout, 3, 3) [PyTorch]."""
    n, cin, h, w = x_nchw.shape
    cout = weight.shape[1]

    # NCHW -> NHWC (channels on lanes), bf16 MXU operands, pad one zero row/col.
    x = jnp.transpose(x_nchw.astype(jnp.bfloat16), (0, 2, 3, 1))
    x_pad = jnp.pad(x, ((0, 0), (0, 1), (0, 1), (0, 0)))
    w_even, w_odd = _pack_weights(weight)

    # Row-block tiling of H (bounds VMEM for v7x; 2nd parallel grid axis for megacore).
    hb = _largest_divisor_leq(h, max(1, _BLOCK_BYTES_TARGET // (2 * w * 2 * cout * 4)))
    num_hb = h // hb

    kern = functools.partial(upconv_kernel, hb=hb, cout=cout)
    y5, stats = pl.pallas_call(
        kern,
        out_shape=(
            jax.ShapeDtypeStruct((n, h, 2, w, 2 * cout), jnp.float32),
            jax.ShapeDtypeStruct((n, num_hb, 2, cout), jnp.float32),
        ),
        grid=(n, num_hb),
        in_specs=[
            pl.BlockSpec((1, h + 1, w + 1, cin), lambda i, j: (i, 0, 0, 0)),
            pl.BlockSpec((4 * cin, 2 * cout), lambda i, j: (0, 0)),
            pl.BlockSpec((4 * cin, 2 * cout), lambda i, j: (0, 0)),
        ],
        out_specs=[
            pl.BlockSpec((1, hb, 2, w, 2 * cout), lambda i, j: (i, j, 0, 0, 0)),
            pl.BlockSpec((1, 1, 2, cout), lambda i, j: (i, j, 0, 0)),
        ],
        compiler_params=pltpu.CompilerParams(
            dimension_semantics=("parallel", "parallel"),
            vmem_limit_bytes=VMEM_LIMIT_BYTES),
    )(x_pad, w_even, w_odd)

    # Host-side reduction of BN partials (tiny, Cout-sized) -> per-channel scale/bias.
    tot = jnp.sum(stats, axis=(0, 1))                      # (2, Cout): [sum, sum_sq]
    cnt = jnp.float32(n * 2 * h * 2 * w)
    mean = tot[0] / cnt
    var = jnp.maximum(tot[1] / cnt - mean * mean, 0.0)     # biased (train-mode) variance
    inv = lax.rsqrt(var + BN_EPS)
    g32 = gamma.astype(jnp.float32)
    scale = (g32 * inv).reshape(1, 1, 1, cout)
    bias = (beta.astype(jnp.float32) - mean * g32 * inv).reshape(1, 1, 1, cout)

    # (N, H, 2, W, 2*Cout) -> (N, 2H, 2W, Cout): pure contiguous regrouping (free).
    y = y5.reshape(n, 2 * h, 2 * w, cout)

    # Tiled elementwise normalize + ReLU (f32 epilogue; one read + one write of y).
    rb = _largest_divisor_leq(2 * h, max(1, _BLOCK_BYTES_TARGET // (2 * w * cout * 4)))
    out = pl.pallas_call(
        bn_relu_kernel,
        out_shape=jax.ShapeDtypeStruct((n, 2 * h, 2 * w, cout), jnp.float32),
        grid=(n, (2 * h) // rb),
        in_specs=[
            pl.BlockSpec((1, rb, 2 * w, cout), lambda i, j: (i, j, 0, 0)),
            pl.BlockSpec((1, 1, 1, cout), lambda i, j: (0, 0, 0, 0)),
            pl.BlockSpec((1, 1, 1, cout), lambda i, j: (0, 0, 0, 0)),
        ],
        out_specs=pl.BlockSpec((1, rb, 2 * w, cout), lambda i, j: (i, j, 0, 0)),
        compiler_params=pltpu.CompilerParams(
            dimension_semantics=("parallel", "parallel"),
            vmem_limit_bytes=VMEM_LIMIT_BYTES),
    )(y, scale, bias)

    # Back to NCHW to match the PyTorch module's output convention.
    # TODO(synk): drop this (and the input transpose) if the surrounding model stays NHWC.
    return jnp.transpose(out, (0, 3, 1, 2))


def upconv_reference(x_nchw, weight, gamma, beta):
    # Pure-JAX reference: ConvTranspose2d == lhs-dilated conv with flipped, io-swapped kernel.
    w_oihw = jnp.flip(jnp.transpose(weight, (1, 0, 2, 3)), axis=(2, 3))
    y = lax.conv_general_dilated(
        x_nchw, w_oihw, window_strides=(1, 1), padding=((1, 2), (1, 2)),
        lhs_dilation=(2, 2), dimension_numbers=("NCHW", "OIHW", "NCHW"))
    mean = y.mean(axis=(0, 2, 3), keepdims=True)
    var = ((y - mean) ** 2).mean(axis=(0, 2, 3), keepdims=True)   # biased (train-mode)
    yn = (y - mean) * lax.rsqrt(var + BN_EPS) * gamma.reshape(1, -1, 1, 1) \
        + beta.reshape(1, -1, 1, 1)
    return jnp.maximum(yn, 0.0)


if __name__ == "__main__":
    key = jax.random.PRNGKey(0)
    k_x, k_w = jax.random.split(key)

    n, in_ch, out_ch, h, w = 2, 4, 8, 16, 16
    x = jax.random.normal(k_x, (n, in_ch, h, w), jnp.float32)
    # ConvTranspose2d weight shape: (in_ch, out_ch, kH, kW).
    weight = 0.1 * jax.random.normal(k_w, (in_ch, out_ch, 3, 3), jnp.float32)
    # BatchNorm2d default init: weight=1, bias=0.
    gamma = jnp.ones((out_ch,), jnp.float32)
    beta = jnp.zeros((out_ch,), jnp.float32)

    out = jax.block_until_ready(upconv_forward(x, weight, gamma, beta))

    # Reference with bf16-quantized operands: the kernel feeds the MXU bf16 with f32
    # accumulation, so products are exact and only summation order differs (~1e-6).
    xq = x.astype(jnp.bfloat16).astype(jnp.float32)
    wq = weight.astype(jnp.bfloat16).astype(jnp.float32)
    ref = upconv_reference(xq, wq, gamma, beta)

    assert out.shape == (n, out_ch, 2 * h, 2 * w), out.shape
    max_err = float(jnp.max(jnp.abs(out - ref)))
    assert jnp.allclose(out, ref, atol=2e-3, rtol=2e-3), max_err

    print("KERNEL_OK")
</pallas_src>

<mosaic_0001>
module attributes {stable_mosaic.version = 11 : i64} {
  func.func @upconv_kernel(%arg0: i32, %arg1: i32, %arg2: memref<1x17x17x4xbf16, #tpu.memory_space<vmem>>, %arg3: memref<16x16xbf16, #tpu.memory_space<vmem>>, %arg4: memref<16x16xbf16, #tpu.memory_space<vmem>>, %arg5: memref<1x16x2x16x16xf32, #tpu.memory_space<vmem>>, %arg6: memref<1x1x2x8xf32, #tpu.memory_space<vmem>>) attributes {dimension_semantics = [#tpu.dimension_semantics<parallel>, #tpu.dimension_semantics<parallel>], iteration_bounds = array<i64: 2, 1>, scalar_prefetch = 0 : i64, scratch_operands = 0 : i64, tpu.core_type = #tpu.core_type<tc>, window_params = [{transform_indices = @transform_0, window_bounds = array<i64: 1, 17, 17, 4>}, {pipeline_mode = #tpu.pipeline_mode<synchronous>, transform_indices = @transform_1, window_bounds = array<i64: 16, 16>}, {pipeline_mode = #tpu.pipeline_mode<synchronous>, transform_indices = @transform_2, window_bounds = array<i64: 16, 16>}, {transform_indices = @transform_3, window_bounds = array<i64: 1, 16, 2, 16, 16>}, {transform_indices = @transform_4, window_bounds = array<i64: 1, 1, 2, 8>}]} {
    %c16_i32 = arith.constant 16 : i32
    %0 = arith.muli %arg1, %c16_i32 : i32
    %1 = tpu.assume_multiple %0, 16 : i32
    %c0 = arith.constant 0 : index
    %2 = arith.index_cast %1 : i32 to index
    %c0_0 = arith.constant 0 : index
    %c0_1 = arith.constant 0 : index
    %3 = vector.load %arg2[%c0, %2, %c0_0, %c0_1] : memref<1x17x17x4xbf16, #tpu.memory_space<vmem>>, vector<1x17x17x4xbf16>
    %4 = vector.shape_cast %3 : vector<1x17x17x4xbf16> to vector<17x17x4xbf16>
    %5 = vector.extract_strided_slice %4 {offsets = [0, 0, 0], sizes = [17, 16, 4], strides = [1, 1, 1]} : vector<17x17x4xbf16> to vector<17x16x4xbf16>
    %6 = vector.extract_strided_slice %4 {offsets = [0, 1, 0], sizes = [17, 16, 4], strides = [1, 1, 1]} : vector<17x17x4xbf16> to vector<17x16x4xbf16>
    %7 = vector.extract_strided_slice %5 {offsets = [0, 0, 0], sizes = [16, 16, 4], strides = [1, 1, 1]} : vector<17x16x4xbf16> to vector<16x16x4xbf16>
    %8 = vector.extract_strided_slice %6 {offsets = [0, 0, 0], sizes = [16, 16, 4], strides = [1, 1, 1]} : vector<17x16x4xbf16> to vector<16x16x4xbf16>
    %9 = vector.extract_strided_slice %5 {offsets = [1, 0, 0], sizes = [16, 16, 4], strides = [1, 1, 1]} : vector<17x16x4xbf16> to vector<16x16x4xbf16>
    %10 = vector.extract_strided_slice %6 {offsets = [1, 0, 0], sizes = [16, 16, 4], strides = [1, 1, 1]} : vector<17x16x4xbf16> to vector<16x16x4xbf16>
    %11 = tpu.concatenate %7, %8, %9, %10 in 2 : vector<16x16x4xbf16>, vector<16x16x4xbf16>, vector<16x16x4xbf16>, vector<16x16x4xbf16> -> vector<16x16x16xbf16>
    %c0_2 = arith.constant 0 : index
    %c0_3 = arith.constant 0 : index
    %12 = vector.load %arg3[%c0_2, %c0_3] : memref<16x16xbf16, #tpu.memory_space<vmem>>, vector<16x16xbf16>
    "tpu.trace_start"() <{level = 10 : i32, message = "hwc,cd->hwd"}> : () -> ()
    %cst = arith.constant dense<0.000000e+00> : vector<16x16x16xf32>
    %13 = tpu.matmul %11, %12, %cst {dimension_numbers = #tpu.dot_dimension_numbers<[2], [0], [0, 1], [1], [0, 0, 0, 1, 1, 1], [], []>} : vector<16x16x16xbf16>, vector<16x16xbf16>, vector<16x16x16xf32> -> vector<16x16x16xf32>
    "tpu.trace_stop"() : () -> ()
    %c0_4 = arith.constant 0 : index
    %c0_5 = arith.constant 0 : index
    %14 = vector.load %arg4[%c0_4, %c0_5] : memref<16x16xbf16, #tpu.memory_space<vmem>>, vector<16x16xbf16>
    "tpu.trace_start"() <{level = 10 : i32, message = "hwc,cd->hwd"}> : () -> ()
    %cst_6 = arith.constant dense<0.000000e+00> : vector<16x16x16xf32>
    %15 = tpu.matmul %11, %14, %cst_6 {dimension_numbers = #tpu.dot_dimension_numbers<[2], [0], [0, 1], [1], [0, 0, 0, 1, 1, 1], [], []>} : vector<16x16x16xbf16>, vector<16x16xbf16>, vector<16x16x16xf32> -> vector<16x16x16xf32>
    "tpu.trace_stop"() : () -> ()
    %c0_7 = arith.constant 0 : index
    %c0_8 = arith.constant 0 : index
    %c0_9 = arith.constant 0 : index
    %c0_10 = arith.constant 0 : index
    %c0_11 = arith.constant 0 : index
    %16 = vector.load %arg5[%c0_7, %c0_8, %c0_9, %c0_10, %c0_11] : memref<1x16x2x16x16xf32, #tpu.memory_space<vmem>>, vector<1x16x1x16x16xf32>
    %17 = vector.shape_cast %16 : vector<1x16x1x16x16xf32> to vector<16x16x16xf32>
    %18 = vector.shape_cast %13 : vector<16x16x16xf32> to vector<1x16x1x16x16xf32>
    tpu.vector_store %arg5[%c0_7, %c0_8, %c0_9, %c0_10, %c0_11], %18 {strides = array<i32>} : memref<1x16x2x16x16xf32, #tpu.memory_space<vmem>>, vector<1x16x1x16x16xf32>,
    %c0_12 = arith.constant 0 : index
    %c0_13 = arith.constant 0 : index
    %c1 = arith.constant 1 : index
    %c0_14 = arith.constant 0 : index
    %c0_15 = arith.constant 0 : index
    %19 = vector.load %arg5[%c0_12, %c0_13, %c1, %c0_14, %c0_15] : memref<1x16x2x16x16xf32, #tpu.memory_space<vmem>>, vector<1x16x1x16x16xf32>
    %20 = vector.shape_cast %19 : vector<1x16x1x16x16xf32> to vector<16x16x16xf32>
    %21 = vector.shape_cast %15 : vector<16x16x16xf32> to vector<1x16x1x16x16xf32>
    tpu.vector_store %arg5[%c0_12, %c0_13, %c1, %c0_14, %c0_15], %21 {strides = array<i32>} : memref<1x16x2x16x16xf32, #tpu.memory_space<vmem>>, vector<1x16x1x16x16xf32>,
    %cst_16 = arith.constant dense<0.000000e+00> : vector<16xf32>
    %22 = vector.multi_reduction <add>, %13, %cst_16 [0, 1] : vector<16x16x16xf32> to vector<16xf32>
    %23 = vector.shape_cast %22 : vector<16xf32> to vector<1x1x16xf32>
    %cst_17 = arith.constant dense<0.000000e+00> : vector<16xf32>
    %24 = vector.multi_reduction <add>, %15, %cst_17 [0, 1] : vector<16x16x16xf32> to vector<16xf32>
    %25 = vector.shape_cast %24 : vector<16xf32> to vector<1x1x16xf32>
    %26 = arith.addf %23, %25 : vector<1x1x16xf32>
    %27 = arith.mulf %13, %13 : vector<16x16x16xf32>
    %cst_18 = arith.constant dense<0.000000e+00> : vector<16xf32>
    %28 = vector.multi_reduction <add>, %27, %cst_18 [0, 1] : vector<16x16x16xf32> to vector<16xf32>
    %29 = vector.shape_cast %28 : vector<16xf32> to vector<1x1x16xf32>
    %30 = arith.mulf %15, %15 : vector<16x16x16xf32>
    %cst_19 = arith.constant dense<0.000000e+00> : vector<16xf32>
    %31 = vector.multi_reduction <add>, %30, %cst_19 [0, 1] : vector<16x16x16xf32> to vector<16xf32>
    %32 = vector.shape_cast %31 : vector<16xf32> to vector<1x1x16xf32>
    %33 = arith.addf %29, %32 : vector<1x1x16xf32>
    %34 = vector.extract_strided_slice %26 {offsets = [0, 0, 0], sizes = [1, 1, 8], strides = [1, 1, 1]} : vector<1x1x16xf32> to vector<1x1x8xf32>
    %35 = vector.shape_cast %34 : vector<1x1x8xf32> to vector<1x8xf32>
    %36 = vector.extract_strided_slice %26 {offsets = [0, 0, 8], sizes = [1, 1, 8], strides = [1, 1, 1]} : vector<1x1x16xf32> to vector<1x1x8xf32>
    %37 = vector.shape_cast %36 : vector<1x1x8xf32> to vector<1x8xf32>
    %38 = arith.addf %35, %37 : vector<1x8xf32>
    %c0_20 = arith.constant 0 : index
    %c0_21 = arith.constant 0 : index
    %c0_22 = arith.constant 0 : index
    %c0_23 = arith.constant 0 : index
    %39 = vector.load %arg6[%c0_20, %c0_21, %c0_22, %c0_23] : memref<1x1x2x8xf32, #tpu.memory_space<vmem>>, vector<1x1x1x8xf32>
    %40 = vector.shape_cast %39 : vector<1x1x1x8xf32> to vector<1x8xf32>
    %41 = vector.shape_cast %38 : vector<1x8xf32> to vector<1x1x1x8xf32>
    tpu.vector_store %arg6[%c0_20, %c0_21, %c0_22, %c0_23], %41 {strides = array<i32>} : memref<1x1x2x8xf32, #tpu.memory_space<vmem>>, vector<1x1x1x8xf32>,
    %42 = vector.extract_strided_slice %33 {offsets = [0, 0, 0], sizes = [1, 1, 8], strides = [1, 1, 1]} : vector<1x1x16xf32> to vector<1x1x8xf32>
    %43 = vector.shape_cast %42 : vector<1x1x8xf32> to vector<1x8xf32>
    %44 = vector.extract_strided_slice %33 {offsets = [0, 0, 8], sizes = [1, 1, 8], strides = [1, 1, 1]} : vector<1x1x16xf32> to vector<1x1x8xf32>
    %45 = vector.shape_cast %44 : vector<1x1x8xf32> to vector<1x8xf32>
    %46 = arith.addf %43, %45 : vector<1x8xf32>
    %c0_24 = arith.constant 0 : index
    %c0_25 = arith.constant 0 : index
    %c1_26 = arith.constant 1 : index
    %c0_27 = arith.constant 0 : index
    %47 = vector.load %arg6[%c0_24, %c0_25, %c1_26, %c0_27] : memref<1x1x2x8xf32, #tpu.memory_space<vmem>>, vector<1x1x1x8xf32>
    %48 = vector.shape_cast %47 : vector<1x1x1x8xf32> to vector<1x8xf32>
    %49 = vector.shape_cast %46 : vector<1x8xf32> to vector<1x1x1x8xf32>
    tpu.vector_store %arg6[%c0_24, %c0_25, %c1_26, %c0_27], %49 {strides = array<i32>} : memref<1x1x2x8xf32, #tpu.memory_space<vmem>>, vector<1x1x1x8xf32>,
    return
  }
  func.func @transform_0(%arg0: i32, %arg1: i32) -> (i32, i32, i32, i32) {
    %c0_i32 = arith.constant 0 : i32
    %c0_i32_0 = arith.constant 0 : i32
    %c0_i32_1 = arith.constant 0 : i32
    %c0_i32_2 = arith.constant 0 : i32
    return %arg0, %c0_i32, %c0_i32_0, %c0_i32_1 : i32, i32, i32, i32
  }
  func.func @transform_1(%arg0: i32, %arg1: i32) -> (i32, i32) {
    %c0_i32 = arith.constant 0 : i32
    %c0_i32_0 = arith.constant 0 : i32
    %c0_i32_1 = arith.constant 0 : i32
    return %c0_i32, %c0_i32_0 : i32, i32
  }
  func.func @transform_2(%arg0: i32, %arg1: i32) -> (i32, i32) {
    %c0_i32 = arith.constant 0 : i32
    %c0_i32_0 = arith.constant 0 : i32
    %c0_i32_1 = arith.constant 0 : i32
    return %c0_i32, %c0_i32_0 : i32, i32
  }
  func.func @transform_3(%arg0: i32, %arg1: i32) -> (i32, i32, i32, i32, i32) {
    %c0_i32 = arith.constant 0 : i32
    %c0_i32_0 = arith.constant 0 : i32
    %c0_i32_1 = arith.constant 0 : i32
    %c0_i32_2 = arith.constant 0 : i32
    return %arg0, %arg1, %c0_i32, %c0_i32_0, %c0_i32_1 : i32, i32, i32, i32, i32
  }
  func.func @transform_4(%arg0: i32, %arg1: i32) -> (i32, i32, i32, i32) {
    %c0_i32 = arith.constant 0 : i32
    %c0_i32_0 = arith.constant 0 : i32
    %c0_i32_1 = arith.constant 0 : i32
    return %arg0, %arg1, %c0_i32, %c0_i32_0 : i32, i32, i32, i32
  }
}

module attributes {stable_mosaic.version = 11 : i64} {
  func.func @bn_relu_kernel(%arg0: i32, %arg1: i32, %arg2: memref<1x32x32x8xf32, #tpu.memory_space<vmem>>, %arg3: memref<1x1x1x8xf32, #tpu.memory_space<vmem>>, %arg4: memref<1x1x1x8xf32, #tpu.memory_space<vmem>>, %arg5: memref<1x32x32x8xf32, #tpu.memory_space<vmem>>) attributes {dimension_semantics = [#tpu.dimension_semantics<parallel>, #tpu.dimension_semantics<parallel>], iteration_bounds = array<i64: 2, 1>, scalar_prefetch = 0 : i64, scratch_operands = 0 : i64, tpu.core_type = #tpu.core_type<tc>, window_params = [{transform_indices = @transform_0, window_bounds = array<i64: 1, 32, 32, 8>}, {pipeline_mode = #tpu.pipeline_mode<synchronous>, transform_indices = @transform_1, window_bounds = array<i64: 1, 1, 1, 8>}, {pipeline_mode = #tpu.pipeline_mode<synchronous>, transform_indices = @transform_2, window_bounds = array<i64: 1, 1, 1, 8>}, {transform_indices = @transform_3, window_bounds = array<i64: 1, 32, 32, 8>}]} {
    %c0 = arith.constant 0 : index
    %c0_0 = arith.constant 0 : index
    %c0_1 = arith.constant 0 : index
    %c0_2 = arith.constant 0 : index
    %0 = vector.load %arg2[%c0, %c0_0, %c0_1, %c0_2] : memref<1x32x32x8xf32, #tpu.memory_space<vmem>>, vector<1x32x32x8xf32>
    %c0_3 = arith.constant 0 : index
    %c0_4 = arith.constant 0 : index
    %c0_5 = arith.constant 0 : index
    %c0_6 = arith.constant 0 : index
    %1 = vector.load %arg3[%c0_3, %c0_4, %c0_5, %c0_6] : memref<1x1x1x8xf32, #tpu.memory_space<vmem>>, vector<1x1x1x8xf32>
    %2 = vector.broadcast %1 : vector<1x1x1x8xf32> to vector<1x32x32x8xf32>
    %3 = arith.mulf %0, %2 : vector<1x32x32x8xf32>
    %c0_7 = arith.constant 0 : index
    %c0_8 = arith.constant 0 : index
    %c0_9 = arith.constant 0 : index
    %c0_10 = arith.constant 0 : index
    %4 = vector.load %arg4[%c0_7, %c0_8, %c0_9, %c0_10] : memref<1x1x1x8xf32, #tpu.memory_space<vmem>>, vector<1x1x1x8xf32>
    %5 = vector.broadcast %4 : vector<1x1x1x8xf32> to vector<1x32x32x8xf32>
    %6 = arith.addf %3, %5 : vector<1x32x32x8xf32>
    %cst = arith.constant 0.000000e+00 : f32
    %7 = vector.broadcast %cst : f32 to vector<1x32x32x8xf32>
    %8 = arith.maximumf %6, %7 : vector<1x32x32x8xf32>
    %c0_11 = arith.constant 0 : index
    %c0_12 = arith.constant 0 : index
    %c0_13 = arith.constant 0 : index
    %c0_14 = arith.constant 0 : index
    %9 = vector.load %arg5[%c0_11, %c0_12, %c0_13, %c0_14] : memref<1x32x32x8xf32, #tpu.memory_space<vmem>>, vector<1x32x32x8xf32>
    tpu.vector_store %arg5[%c0_11, %c0_12, %c0_13, %c0_14], %8 {strides = array<i32>} : memref<1x32x32x8xf32, #tpu.memory_space<vmem>>, vector<1x32x32x8xf32>,
    return
  }
  func.func @transform_0(%arg0: i32, %arg1: i32) -> (i32, i32, i32, i32) {
    %c0_i32 = arith.constant 0 : i32
    %c0_i32_0 = arith.constant 0 : i32
    %c0_i32_1 = arith.constant 0 : i32
    return %arg0, %arg1, %c0_i32, %c0_i32_0 : i32, i32, i32, i32
  }
  func.func @transform_1(%arg0: i32, %arg1: i32) -> (i32, i32, i32, i32) {
    %c0_i32 = arith.constant 0 : i32
    %c0_i32_0 = arith.constant 0 : i32
    %c0_i32_1 = arith.constant 0 : i32
    %c0_i32_2 = arith.constant 0 : i32
    %c0_i32_3 = arith.constant 0 : i32
    return %c0_i32, %c0_i32_0, %c0_i32_1, %c0_i32_2 : i32, i32, i32, i32
  }
  func.func @transform_2(%arg0: i32, %arg1: i32) -> (i32, i32, i32, i32) {
    %c0_i32 = arith.constant 0 : i32
    %c0_i32_0 = arith.constant 0 : i32
    %c0_i32_1 = arith.constant 0 : i32
    %c0_i32_2 = arith.constant 0 : i32
    %c0_i32_3 = arith.constant 0 : i32
    return %c0_i32, %c0_i32_0, %c0_i32_1, %c0_i32_2 : i32, i32, i32, i32
  }
  func.func @transform_3(%arg0: i32, %arg1: i32) -> (i32, i32, i32, i32) {
    %c0_i32 = arith.constant 0 : i32
    %c0_i32_0 = arith.constant 0 : i32
    %c0_i32_1 = arith.constant 0 : i32
    return %arg0, %arg1, %c0_i32, %c0_i32_0 : i32, i32, i32, i32
  }
}

</mosaic_0001>

<llo_original>
// kernel: upconv_forward.3
$region0: #{upconv_forward.3}
  #allocation0 [shape = 'u32[]', space=smem, size = 0x4, offset = 0x4, fixed_abs, tag = 'smem constant byte address 0x4 - core index']
  #allocation1 [shape = 'u32[144,128]{1,0:T(1,128)}', space=vmem, size = 0x12000, scoped, tag = 'internal scratch']
  %s0 = inlined_call_operand.vmem [shape: f32[2,32,32,8], index: 0, kind: input, shape index: {}]
  %s1 = inlined_call_operand.vmem [shape: f32[1,1,1,8], index: 1, kind: input, shape index: {}]
  %s2 = inlined_call_operand.vmem [shape: f32[1,1,1,8], index: 2, kind: input, shape index: {}]
  %s3 = inlined_call_operand.vmem [shape: f32[2,32,32,8], index: 3, kind: output, shape index: {}]
  %s4 = sld [smem:[#allocation0]]
  $region45: #{upconv_forward.3} parent=0
    _
  %s6 = ssub.s32 1, %s4
  %s7 = scalar_select 0, %s6, %s4
  loop: start=0, step=1, limit=4
  $region2: #{upconv_forward.3} parent=0 // loop_pre_header
    _
  $region3: #{upconv_forward.3} parent=0 // loop_header
    %s9 = sphi 0, %s13
    %p10 = scmp.ge.s32.totalorder %s9, 4
    %s16 = sphi 0, %s28
    %s17 = sphi 0, %s24
    %s18 = sphi 0, %s16
    %s19 = sphi 0, %s17
    %s20 = sphi 0, %s18
    %s21 = sphi 0, %s19
    %s33 = sphi 0, %s35
    %s36 = sphi 0, %s33
    %s37 = sphi 0, %s36
    %s53 = sphi 0, %s37
    %s57 = sphi 0, %s57
    %s59 = sphi 0, %s57
    %s60 = sphi 0, %s59
    %s74 = sphi 0, %s60
    %s78 = sphi 0, %s78
    %s80 = sphi 0, %s78
    %s81 = sphi 0, %s80
    %s95 = sphi 0, %s81
    %s103 = sphi 0, %s105
    %s106 = sphi 0, %s103
    %s107 = sphi 0, %s106
    %s123 = sphi 0, %s107
  $region4: #{upconv_forward.3} parent=0 // loop_header_branch
    %12 = sbr.rel (%p10) target = $region8
  $region5: #{upconv_forward.3} parent=0 // loop_body
    %s14 = ssub.s32 %s9, 1
    %s15 = ssub.s32 %s9, 2
    %s22 = sadd.s32 1, %s17
    %p23 = scmp.ge.s32.totalorder %s22, 1
    %s24 = scalar_select %p23, 0, %s22
    %s25 = sadd.s32 1, %s16
    %s26 = scalar_select %p23, %s25, %s16
    %p27 = scmp.ge.s32.totalorder %s26, 2
    %s28 = scalar_select %p27, 0, %s26
    %s29 = ssub.s32 %s16, %s28
    %s30 = ssub.s32 %s17, %s24
    %s31 = sor.u32 %s29, %s30
    %p32 = scmp.eq.s32.totalorder %s31, 0
    %s34 = sadd.s32 %s33, 1
    %s35 = scalar_select %p32, %s33, %s34
    %p38 = pneg %p32
    %p39 = scmp.eq.s32.totalorder %s9, 1
    %p40 = por %p38, %p39
    %p41 = scmp.ne.s32.totalorder %s33, %s36
    %p42 = scmp.eq.s32.totalorder %s9, 0
    %p43 = por %p41, %p42
    %p44 = scmp.ne.s32.totalorder %s33, %s36
    %p45 = scmp.eq.s32.totalorder %s14, 1
    %p46 = por %p44, %p45
    %p47 = scmp.ne.s32.totalorder %s36, %s37
    %p48 = scmp.eq.s32.totalorder %s14, 0
    %p49 = por %p47, %p48
    %p50 = scmp.ne.s32.totalorder %s36, %s37
    %p51 = scmp.eq.s32.totalorder %s15, 1
    %p52 = por %p50, %p51
    %p54 = scmp.ne.s32.totalorder %s37, %s53
    %p55 = scmp.eq.s32.totalorder %s15, 0
    %p56 = por %p54, %p55
    %s58 = sadd.s32 %s57, 1
    %p61 = scmp.eq.s32.totalorder %s9, 1
    %p62 = scmp.ne.s32.totalorder %s57, %s59
    %p63 = scmp.eq.s32.totalorder %s9, 0
    %p64 = por %p62, %p63
    %p65 = scmp.ne.s32.totalorder %s57, %s59
    %p66 = scmp.eq.s32.totalorder %s14, 1
    %p67 = por %p65, %p66
    %p68 = scmp.ne.s32.totalorder %s59, %s60
    %p69 = scmp.eq.s32.totalorder %s14, 0
    %p70 = por %p68, %p69
    %p71 = scmp.ne.s32.totalorder %s59, %s60
    %p72 = scmp.eq.s32.totalorder %s15, 1
    %p73 = por %p71, %p72
    %p75 = scmp.ne.s32.totalorder %s60, %s74
    %p76 = scmp.eq.s32.totalorder %s15, 0
    %p77 = por %p75, %p76
    %s79 = sadd.s32 %s78, 1
    %p82 = scmp.eq.s32.totalorder %s9, 1
    %p83 = scmp.ne.s32.totalorder %s78, %s80
    %p84 = scmp.eq.s32.totalorder %s9, 0
    %p85 = por %p83, %p84
    %p86 = scmp.ne.s32.totalorder %s78, %s80
    %p87 = scmp.eq.s32.totalorder %s14, 1
    %p88 = por %p86, %p87
    %p89 = scmp.ne.s32.totalorder %s80, %s81
    %p90 = scmp.eq.s32.totalorder %s14, 0
    %p91 = por %p89, %p90
    %p92 = scmp.ne.s32.totalorder %s80, %s81
    %p93 = scmp.eq.s32.totalorder %s15, 1
    %p94 = por %p92, %p93
    %p96 = scmp.ne.s32.totalorder %s81, %s95
    %p97 = scmp.eq.s32.totalorder %s15, 0
    %p98 = por %p96, %p97
    %s99 = ssub.s32 %s16, %s28
    %s100 = ssub.s32 %s17, %s24
    %s101 = sor.u32 %s99, %s100
    %p102 = scmp.eq.s32.totalorder %s101, 0
    %s104 = sadd.s32 %s103, 1
    %s105 = scalar_select %p102, %s103, %s104
    %p108 = pneg %p102
    %p109 = scmp.eq.s32.totalorder %s9, 1
    %p110 = por %p108, %p109
    %p111 = scmp.ne.s32.totalorder %s103, %s106
    %p112 = scmp.eq.s32.totalorder %s9, 0
    %p113 = por %p111, %p112
    %p114 = scmp.ne.s32.totalorder %s103, %s106
    %p115 = scmp.eq.s32.totalorder %s14, 1
    %p116 = por %p114, %p115
    %p117 = scmp.ne.s32.totalorder %s106, %s107
    %p118 = scmp.eq.s32.totalorder %s14, 0
    %p119 = por %p117, %p118
    %p120 = scmp.ne.s32.totalorder %s106, %s107
    %p121 = scmp.eq.s32.totalorder %s15, 1
    %p122 = por %p120, %p121
    %p124 = scmp.ne.s32.totalorder %s107, %s123
    %p125 = scmp.eq.s32.totalorder %s15, 0
    %p126 = por %p124, %p125
    %p127 = scmp.le.s32.totalorder 1, %s9
    %p128 = scmp.lt.s32.totalorder %s9, 3
    %p129 = pnand %p127, %p128
    %p130 = pneg %p129
    // Predicated region
    $region9: #{upconv_forward.3} parent=5 // pred_check
      _
    $region10: #{upconv_forward.3} parent=5 // pred_check_branch
      %132 = sbr.rel (%p129) target = $region12
    $region11: #{upconv_forward.3} parent=5 // pred_region
      %s133 = ssub.s32 %s9, 1
      // Predicated region
      $region13: #{upconv_forward.3} parent=11 // pred_check
        %p134 = pneg %p70
      $region14: #{upconv_forward.3} parent=11 // pred_check_branch
        %136 = sbr.rel (%p134) target = $region16
      $region15: #{upconv_forward.3} parent=11 // pred_region
        _
      $region16: #{upconv_forward.3} parent=11 // pred_fallthru
        _
      // Predicated region
      $region17: #{upconv_forward.3} parent=11 // pred_check
        %p137 = pneg %p91
      $region18: #{upconv_forward.3} parent=11 // pred_check_branch
        %139 = sbr.rel (%p137) target = $region20
      $region19: #{upconv_forward.3} parent=11 // pred_region
        _
      $region20: #{upconv_forward.3} parent=11 // pred_fallthru
        _
    $region12: #{upconv_forward.3} parent=5 // pred_fallthru
      _
    %p140 = scmp.lt.s32.totalorder %s9, 2
    // Predicated region
    $region21: #{upconv_forward.3} parent=5 // pred_check
      %p141 = pneg %p140
    $region22: #{upconv_forward.3} parent=5 // pred_check_branch
      %143 = sbr.rel (%p141) target = $region24
    $region23: #{upconv_forward.3} parent=5 // pred_region
      // Predicated region
      $region25: #{upconv_forward.3} parent=23 // pred_check
        %p144 = pneg %p43
      $region26: #{upconv_forward.3} parent=23 // pred_check_branch
        %146 = sbr.rel (%p144) target = $region28
      $region27: #{upconv_forward.3} parent=23 // pred_region
        %s147 = smul.u32 32, %s17
        %p148 = scmp.lt.s32.totalorder %s16, 1
        %s149 = scalar_select %p148, %s16, 1
        %p150 = scmp.lt.s32.totalorder %s147, 31
        %s151 = scalar_select %p150, %s147, 31
        %s152 = smul.addr %s151, 4
        %s153 = smul.addr %s149, 128
        %s154 = sadd.s32 %s152, %s153
        %s155 = smul.addr %s154, 8
        %s156 = scalar_lea.vmem %s0, %s155
        %s157 = smul.u32 32, %s17
      $region28: #{upconv_forward.3} parent=23 // pred_fallthru
        _
    $region24: #{upconv_forward.3} parent=5 // pred_fallthru
      _
    %p158 = scmp.le.s32.totalorder 1, %s9
    %p159 = scmp.lt.s32.totalorder %s9, 3
    %p160 = pnand %p158, %p159
    %p161 = pneg %p160
    // Predicated region
    $region29: #{upconv_forward.3} parent=5 // pred_check
      _
    $region30: #{upconv_forward.3} parent=5 // pred_check_branch
      %163 = sbr.rel (%p160) target = $region32
    $region31: #{upconv_forward.3} parent=5 // pred_region
      %s164 = ssub.s32 %s9, 1
      %s165 = smul.u32 32, %s19
      %p166 = scmp.lt.s32.totalorder %s18, 1
      %s167 = scalar_select %p166, %s18, 1
      %p168 = scmp.lt.s32.totalorder %s165, 31
      %s169 = scalar_select %p168, %s165, 31
      %s170 = smul.addr %s169, 4
      %s171 = smul.addr %s167, 128
      %s172 = sadd.s32 %s170, %s171
      %s173 = smul.addr %s172, 8
      %s174 = scalar_lea.vmem %s0, %s173
      %p175 = pneg %p49
      %p176 = pneg %p46
      %p177 = pneg %p70
      %p178 = pneg %p67
      %p179 = pneg %p91
      %p180 = pneg %p88
      %p181 = pneg %p119
      %p182 = pneg %p116
      %s183 = smul.u32 32, %s19
      %p184 = scmp.lt.s32.totalorder %s18, 1
      %s185 = scalar_select %p184, %s18, 1
      %p186 = scmp.lt.s32.totalorder %s183, 31
      %s187 = scalar_select %p186, %s183, 31
      %s188 = smul.addr %s187, 4
      %s189 = smul.addr %s185, 128
      %s190 = sadd.s32 %s188, %s189
      %s191 = smul.addr %s190, 8
      %s192 = scalar_lea.vmem %s3, %s191
      %s193 = smul.u32 32, %s19
      %p194 = scmp.lt.s32.totalorder %s18, 1
      %s195 = scalar_select %p194, %s18, 1
      %p196 = scmp.lt.s32.totalorder %s193, 31
      %s197 = scalar_select %p196, %s193, 31
      %s198 = smul.addr %s197, 4
      %s199 = smul.addr %s195, 128
      %s200 = sadd.s32 %s198, %s199
      %s201 = smul.addr %s200, 8
      %s202 = scalar_lea.vmem %s0, %s201
      %s203 = smul.u32 32, %s19
      %s204 = smul.u32 32, %s19
      %p205 = scmp.lt.s32.totalorder %s18, 1
      %s206 = scalar_select %p205, %s18, 1
      %p207 = scmp.lt.s32.totalorder %s204, 31
      %s208 = scalar_select %p207, %s204, 31
      %s209 = smul.addr %s208, 4
      %s210 = smul.addr %s206, 128
      %s211 = sadd.s32 %s209, %s210
      %s212 = smul.addr %s211, 8
      %s213 = scalar_lea.vmem %s3, %s212
      %s214 = smul.u32 32, %s19
      %v215 = vld [vmem:[%s202] sm:$0xff]
      %v216 = vld [vmem:[%s202 + $0x8] sm:$0xff]
      %v217 = vld [vmem:[%s202 + $0x10] sm:$0xff]
      %v218 = vld [vmem:[%s202 + $0x18] sm:$0xff]
      %v219 = vld [vmem:[%s202 + $0x20] sm:$0xff]
      %v220 = vld [vmem:[%s202 + $0x28] sm:$0xff]
      %v221 = vld [vmem:[%s202 + $0x30] sm:$0xff]
      %v222 = vld [vmem:[%s202 + $0x38] sm:$0xff]
      %v223 = vld [vmem:[%s202 + $0x40] sm:$0xff]
      %v224 = vld [vmem:[%s202 + $0x48] sm:$0xff]
      %v225 = vld [vmem:[%s202 + $0x50] sm:$0xff]
      %v226 = vld [vmem:[%s202 + $0x58] sm:$0xff]
      %v227 = vld [vmem:[%s202 + $0x60] sm:$0xff]
      %v228 = vld [vmem:[%s202 + $0x68] sm:$0xff]
      %v229 = vld [vmem:[%s202 + $0x70] sm:$0xff]
      %v230 = vld [vmem:[%s202 + $0x78] sm:$0xff]
      %v231 = vld [vmem:[%s202 + $0x80] sm:$0xff]
      %v232 = vld [vmem:[%s202 + $0x88] sm:$0xff]
      %v233 = vld [vmem:[%s202 + $0x90] sm:$0xff]
      %v234 = vld [vmem:[%s202 + $0x98] sm:$0xff]
      %v235 = vld [vmem:[%s202 + $0xa0] sm:$0xff]
      %v236 = vld [vmem:[%s202 + $0xa8] sm:$0xff]
      %v237 = vld [vmem:[%s202 + $0xb0] sm:$0xff]
      %v238 = vld [vmem:[%s202 + $0xb8] sm:$0xff]
      %v239 = vld [vmem:[%s202 + $0xc0] sm:$0xff]
      %v240 = vld [vmem:[%s202 + $0xc8] sm:$0xff]
      %v241 = vld [vmem:[%s202 + $0xd0] sm:$0xff]
      %v242 = vld [vmem:[%s202 + $0xd8] sm:$0xff]
      %v243 = vld [vmem:[%s202 + $0xe0] sm:$0xff]
      %v244 = vld [vmem:[%s202 + $0xe8] sm:$0xff]
      %v245 = vld [vmem:[%s202 + $0xf0] sm:$0xff]
      %v246 = vld [vmem:[%s202 + $0xf8] sm:$0xff]
      %v247 = vld [vmem:[%s202 + $0x100] sm:$0xff]
      %v248 = vld [vmem:[%s202 + $0x108] sm:$0xff]
      %v249 = vld [vmem:[%s202 + $0x110] sm:$0xff]
      %v250 = vld [vmem:[%s202 + $0x118] sm:$0xff]
      %v251 = vld [vmem:[%s202 + $0x120] sm:$0xff]
      %v252 = vld [vmem:[%s202 + $0x128] sm:$0xff]
      %v253 = vld [vmem:[%s202 + $0x130] sm:$0xff]
      %v254 = vld [vmem:[%s202 + $0x138] sm:$0xff]
      %v255 = vld [vmem:[%s202 + $0x140] sm:$0xff]
      %v256 = vld [vmem:[%s202 + $0x148] sm:$0xff]
      %v257 = vld [vmem:[%s202 + $0x150] sm:$0xff]
      %v258 = vld [vmem:[%s202 + $0x158] sm:$0xff]
      %v259 = vld [vmem:[%s202 + $0x160] sm:$0xff]
      %v260 = vld [vmem:[%s202 + $0x168] sm:$0xff]
      %v261 = vld [vmem:[%s202 + $0x170] sm:$0xff]
      %v262 = vld [vmem:[%s202 + $0x178] sm:$0xff]
      %v263 = vld [vmem:[%s202 + $0x180] sm:$0xff]
      %v264 = vld [vmem:[%s202 + $0x188] sm:$0xff]
      %v265 = vld [vmem:[%s202 + $0x190] sm:$0xff]
      %v266 = vld [vmem:[%s202 + $0x198] sm:$0xff]
      %v267 = vld [vmem:[%s202 + $0x1a0] sm:$0xff]
      %v268 = vld [vmem:[%s202 + $0x1a8] sm:$0xff]
      %v269 = vld [vmem:[%s202 + $0x1b0] sm:$0xff]
      %v270 = vld [vmem:[%s202 + $0x1b8] sm:$0xff]
      %v271 = vld [vmem:[%s202 + $0x1c0] sm:$0xff]
      %v272 = vld [vmem:[%s202 + $0x1c8] sm:$0xff]
      %v273 = vld [vmem:[%s202 + $0x1d0] sm:$0xff]
      %v274 = vld [vmem:[%s202 + $0x1d8] sm:$0xff]
      %v275 = vld [vmem:[%s202 + $0x1e0] sm:$0xff]
      %v276 = vld [vmem:[%s202 + $0x1e8] sm:$0xff]
      %v277 = vld [vmem:[%s202 + $0x1f0] sm:$0xff]
      %v278 = vld [vmem:[%s202 + $0x1f8] sm:$0xff]
      %v279 = vld [vmem:[%s202 + $0x200] sm:$0xff]
      %v280 = vld [vmem:[%s202 + $0x208] sm:$0xff]
      %v281 = vld [vmem:[%s202 + $0x210] sm:$0xff]
      %v282 = vld [vmem:[%s202 + $0x218] sm:$0xff]
      %v283 = vld [vmem:[%s202 + $0x220] sm:$0xff]
      %v284 = vld [vmem:[%s202 + $0x228] sm:$0xff]
      %v285 = vld [vmem:[%s202 + $0x230] sm:$0xff]
      %v286 = vld [vmem:[%s202 + $0x238] sm:$0xff]
      %v287 = vld [vmem:[%s202 + $0x240] sm:$0xff]
      %v288 = vld [vmem:[%s202 + $0x248] sm:$0xff]
      %v289 = vld [vmem:[%s202 + $0x250] sm:$0xff]
      %v290 = vld [vmem:[%s202 + $0x258] sm:$0xff]
      %v291 = vld [vmem:[%s202 + $0x260] sm:$0xff]
      %v292 = vld [vmem:[%s202 + $0x268] sm:$0xff]
      %v293 = vld [vmem:[%s202 + $0x270] sm:$0xff]
      %v294 = vld [vmem:[%s202 + $0x278] sm:$0xff]
      %v295 = vld [vmem:[%s202 + $0x280] sm:$0xff]
      %v296 = vld [vmem:[%s202 + $0x288] sm:$0xff]
      %v297 = vld [vmem:[%s202 + $0x290] sm:$0xff]
      %v298 = vld [vmem:[%s202 + $0x298] sm:$0xff]
      %v299 = vld [vmem:[%s202 + $0x2a0] sm:$0xff]
      %v300 = vld [vmem:[%s202 + $0x2a8] sm:$0xff]
      %v301 = vld [vmem:[%s202 + $0x2b0] sm:$0xff]
      %v302 = vld [vmem:[%s202 + $0x2b8] sm:$0xff]
      %v303 = vld [vmem:[%s202 + $0x2c0] sm:$0xff]
      %v304 = vld [vmem:[%s202 + $0x2c8] sm:$0xff]
      %v305 = vld [vmem:[%s202 + $0x2d0] sm:$0xff]
      %v306 = vld [vmem:[%s202 + $0x2d8] sm:$0xff]
      %v307 = vld [vmem:[%s202 + $0x2e0] sm:$0xff]
      %v308 = vld [vmem:[%s202 + $0x2e8] sm:$0xff]
      %v309 = vld [vmem:[%s202 + $0x2f0] sm:$0xff]
      %v310 = vld [vmem:[%s202 + $0x2f8] sm:$0xff]
      %v311 = vld [vmem:[%s202 + $0x300] sm:$0xff]
      %v312 = vld [vmem:[%s202 + $0x308] sm:$0xff]
      %v313 = vld [vmem:[%s202 + $0x310] sm:$0xff]
      %v314 = vld [vmem:[%s202 + $0x318] sm:$0xff]
      %v315 = vld [vmem:[%s202 + $0x320] sm:$0xff]
      %v316 = vld [vmem:[%s202 + $0x328] sm:$0xff]
      %v317 = vld [vmem:[%s202 + $0x330] sm:$0xff]
      %v318 = vld [vmem:[%s202 + $0x338] sm:$0xff]
      %v319 = vld [vmem:[%s202 + $0x340] sm:$0xff]
      %v320 = vld [vmem:[%s202 + $0x348] sm:$0xff]
      %v321 = vld [vmem:[%s202 + $0x350] sm:$0xff]
      %v322 = vld [vmem:[%s202 + $0x358] sm:$0xff]
      %v323 = vld [vmem:[%s202 + $0x360] sm:$0xff]
      %v324 = vld [vmem:[%s202 + $0x368] sm:$0xff]
      %v325 = vld [vmem:[%s202 + $0x370] sm:$0xff]
      %v326 = vld [vmem:[%s202 + $0x378] sm:$0xff]
      %v327 = vld [vmem:[%s202 + $0x380] sm:$0xff]
      %v328 = vld [vmem:[%s202 + $0x388] sm:$0xff]
      %v329 = vld [vmem:[%s202 + $0x390] sm:$0xff]
      %v330 = vld [vmem:[%s202 + $0x398] sm:$0xff]
      %v331 = vld [vmem:[%s202 + $0x3a0] sm:$0xff]
      %v332 = vld [vmem:[%s202 + $0x3a8] sm:$0xff]
      %v333 = vld [vmem:[%s202 + $0x3b0] sm:$0xff]
      %v334 = vld [vmem:[%s202 + $0x3b8] sm:$0xff]
      %v335 = vld [vmem:[%s202 + $0x3c0] sm:$0xff]
      %v336 = vld [vmem:[%s202 + $0x3c8] sm:$0xff]
      %v337 = vld [vmem:[%s202 + $0x3d0] sm:$0xff]
      %v338 = vld [vmem:[%s202 + $0x3d8] sm:$0xff]
      %v339 = vld [vmem:[%s202 + $0x3e0] sm:$0xff]
      %v340 = vld [vmem:[%s202 + $0x3e8] sm:$0xff]
      %v341 = vld [vmem:[%s202 + $0x3f0] sm:$0xff]
      %v342 = vld [vmem:[%s202 + $0x3f8] sm:$0xff]
      %v343 = vld [vmem:[%s1] sm:$0x1]
      %v345 = vlaneseq
      %v346 = vshrl.u32 %v345, 7
      %v347 = vsub.s32 0, %v346
      %v348 = vrot.slane %v343, %v347
      %v350 = vmul.f32 %v215, %v348
      %v351 = vmul.f32 %v216, %v348
      %v352 = vmul.f32 %v217, %v348
      %v353 = vmul.f32 %v218, %v348
      %v354 = vmul.f32 %v219, %v348
      %v355 = vmul.f32 %v220, %v348
      %v356 = vmul.f32 %v221, %v348
      %v357 = vmul.f32 %v222, %v348
      %v358 = vmul.f32 %v223, %v348
      %v359 = vmul.f32 %v224, %v348
      %v360 = vmul.f32 %v225, %v348
      %v361 = vmul.f32 %v226, %v348
      %v362 = vmul.f32 %v227, %v348
      %v363 = vmul.f32 %v228, %v348
      %v364 = vmul.f32 %v229, %v348
      %v365 = vmul.f32 %v230, %v348
      %v366 = vmul.f32 %v231, %v348
      %v367 = vmul.f32 %v232, %v348
      %v368 = vmul.f32 %v233, %v348
      %v369 = vmul.f32 %v234, %v348
      %v370 = vmul.f32 %v235, %v348
      %v371 = vmul.f32 %v236, %v348
      %v372 = vmul.f32 %v237, %v348
      %v373 = vmul.f32 %v238, %v348
      %v374 = vmul.f32 %v239, %v348
      %v375 = vmul.f32 %v240, %v348
      %v376 = vmul.f32 %v241, %v348
      %v377 = vmul.f32 %v242, %v348
      %v378 = vmul.f32 %v243, %v348
      %v379 = vmul.f32 %v244, %v348
      %v380 = vmul.f32 %v245, %v348
      %v381 = vmul.f32 %v246, %v348
      %v382 = vmul.f32 %v247, %v348
      %v383 = vmul.f32 %v248, %v348
      %v384 = vmul.f32 %v249, %v348
      %v385 = vmul.f32 %v250, %v348
      %v386 = vmul.f32 %v251, %v348
      %v387 = vmul.f32 %v252, %v348
      %v388 = vmul.f32 %v253, %v348
      %v389 = vmul.f32 %v254, %v348
      %v390 = vmul.f32 %v255, %v348
      %v391 = vmul.f32 %v256, %v348
      %v392 = vmul.f32 %v257, %v348
      %v393 = vmul.f32 %v258, %v348
      %v394 = vmul.f32 %v259, %v348
      %v395 = vmul.f32 %v260, %v348
      %v396 = vmul.f32 %v261, %v348
      %v397 = vmul.f32 %v262, %v348
      %v398 = vmul.f32 %v263, %v348
      %v399 = vmul.f32 %v264, %v348
      %v400 = vmul.f32 %v265, %v348
      %v401 = vmul.f32 %v266, %v348
      %v402 = vmul.f32 %v267, %v348
      %v403 = vmul.f32 %v268, %v348
      %v404 = vmul.f32 %v269, %v348
      %v405 = vmul.f32 %v270, %v348
      %v406 = vmul.f32 %v271, %v348
      %v407 = vmul.f32 %v272, %v348
      %v408 = vmul.f32 %v273, %v348
      %v409 = vmul.f32 %v274, %v348
      %v410 = vmul.f32 %v275, %v348
      %v411 = vmul.f32 %v276, %v348
      %v412 = vmul.f32 %v277, %v348
      %v413 = vmul.f32 %v278, %v348
      %v414 = vmul.f32 %v279, %v348
      %v415 = vmul.f32 %v280, %v348
      %v416 = vmul.f32 %v281, %v348
      %v417 = vmul.f32 %v282, %v348
      %v418 = vmul.f32 %v283, %v348
      %v419 = vmul.f32 %v284, %v348
      %v420 = vmul.f32 %v285, %v348
      %v421 = vmul.f32 %v286, %v348
      %v422 = vmul.f32 %v287, %v348
      %v423 = vmul.f32 %v288, %v348
      %v424 = vmul.f32 %v289, %v348
      %v425 = vmul.f32 %v290, %v348
      %v426 = vmul.f32 %v291, %v348
      %v427 = vmul.f32 %v292, %v348
      %v428 = vmul.f32 %v293, %v348
      %v429 = vmul.f32 %v294, %v348
      %v430 = vmul.f32 %v295, %v348
      %v431 = vmul.f32 %v296, %v348
      %v432 = vmul.f32 %v297, %v348
      %v433 = vmul.f32 %v298, %v348
      %v434 = vmul.f32 %v299, %v348
      %v435 = vmul.f32 %v300, %v348
      %v436 = vmul.f32 %v301, %v348
      %v437 = vmul.f32 %v302, %v348
      %v438 = vmul.f32 %v303, %v348
      %v439 = vmul.f32 %v304, %v348
      %v440 = vmul.f32 %v305, %v348
      %v441 = vmul.f32 %v306, %v348
      %v442 = vmul.f32 %v307, %v348
      %v443 = vmul.f32 %v308, %v348
      %v444 = vmul.f32 %v309, %v348
      %v445 = vmul.f32 %v310, %v348
      %v446 = vmul.f32 %v311, %v348
      %v447 = vmul.f32 %v312, %v348
      %v448 = vmul.f32 %v313, %v348
      %v449 = vmul.f32 %v314, %v348
      %v450 = vmul.f32 %v315, %v348
      %v451 = vmul.f32 %v316, %v348
      %v452 = vmul.f32 %v317, %v348
      %v453 = vmul.f32 %v318, %v348
      %v454 = vmul.f32 %v319, %v348
      %v455 = vmul.f32 %v320, %v348
      %v456 = vmul.f32 %v321, %v348
      %v457 = vmul.f32 %v322, %v348
      %v458 = vmul.f32 %v323, %v348
      %v459 = vmul.f32 %v324, %v348
      %v460 = vmul.f32 %v325, %v348
      %v461 = vmul.f32 %v326, %v348
      %v462 = vmul.f32 %v327, %v348
      %v463 = vmul.f32 %v328, %v348
      %v464 = vmul.f32 %v329, %v348
      %v465 = vmul.f32 %v330, %v348
      %v466 = vmul.f32 %v331, %v348
      %v467 = vmul.f32 %v332, %v348
      %v468 = vmul.f32 %v333, %v348
      %v469 = vmul.f32 %v334, %v348
      %v470 = vmul.f32 %v335, %v348
      %v471 = vmul.f32 %v336, %v348
      %v472 = vmul.f32 %v337, %v348
      %v473 = vmul.f32 %v338, %v348
      %v474 = vmul.f32 %v339, %v348
      %v475 = vmul.f32 %v340, %v348
      %v476 = vmul.f32 %v341, %v348
      %v477 = vmul.f32 %v342, %v348
      %v478 = vld [vmem:[%s2] sm:$0x1]
      %v480 = vlaneseq
      %v481 = vshrl.u32 %v480, 7
      %v482 = vsub.s32 0, %v481
      %v483 = vrot.slane %v478, %v482
      %v485 = vadd.f32 %v350, %v483
      %v486 = vadd.f32 %v351, %v483
      %v487 = vadd.f32 %v352, %v483
      %v488 = vadd.f32 %v353, %v483
      %v489 = vadd.f32 %v354, %v483
      %v490 = vadd.f32 %v355, %v483
      %v491 = vadd.f32 %v356, %v483
      %v492 = vadd.f32 %v357, %v483
      %v493 = vadd.f32 %v358, %v483
      %v494 = vadd.f32 %v359, %v483
      %v495 = vadd.f32 %v360, %v483
      %v496 = vadd.f32 %v361, %v483
      %v497 = vadd.f32 %v362, %v483
      %v498 = vadd.f32 %v363, %v483
      %v499 = vadd.f32 %v364, %v483
      %v500 = vadd.f32 %v365, %v483
      %v501 = vadd.f32 %v366, %v483
      %v502 = vadd.f32 %v367, %v483
      %v503 = vadd.f32 %v368, %v483
      %v504 = vadd.f32 %v369, %v483
      %v505 = vadd.f32 %v370, %v483
      %v506 = vadd.f32 %v371, %v483
      %v507 = vadd.f32 %v372, %v483
      %v508 = vadd.f32 %v373, %v483
      %v509 = vadd.f32 %v374, %v483
      %v510 = vadd.f32 %v375, %v483
      %v511 = vadd.f32 %v376, %v483
      %v512 = vadd.f32 %v377, %v483
      %v513 = vadd.f32 %v378, %v483
      %v514 = vadd.f32 %v379, %v483
      %v515 = vadd.f32 %v380, %v483
      %v516 = vadd.f32 %v381, %v483
      %v517 = vadd.f32 %v382, %v483
      %v518 = vadd.f32 %v383, %v483
      %v519 = vadd.f32 %v384, %v483
      %v520 = vadd.f32 %v385, %v483
      %v521 = vadd.f32 %v386, %v483
      %v522 = vadd.f32 %v387, %v483
      %v523 = vadd.f32 %v388, %v483
      %v524 = vadd.f32 %v389, %v483
      %v525 = vadd.f32 %v390, %v483
      %v526 = vadd.f32 %v391, %v483
      %v527 = vadd.f32 %v392, %v483
      %v528 = vadd.f32 %v393, %v483
      %v529 = vadd.f32 %v394, %v483
      %v530 = vadd.f32 %v395, %v483
      %v531 = vadd.f32 %v396, %v483
      %v532 = vadd.f32 %v397, %v483
      %v533 = vadd.f32 %v398, %v483
      %v534 = vadd.f32 %v399, %v483
      %v535 = vadd.f32 %v400, %v483
      %v536 = vadd.f32 %v401, %v483
      %v537 = vadd.f32 %v402, %v483
      %v538 = vadd.f32 %v403, %v483
      %v539 = vadd.f32 %v404, %v483
      %v540 = vadd.f32 %v405, %v483
      %v541 = vadd.f32 %v406, %v483
      %v542 = vadd.f32 %v407, %v483
      %v543 = vadd.f32 %v408, %v483
      %v544 = vadd.f32 %v409, %v483
      %v545 = vadd.f32 %v410, %v483
      %v546 = vadd.f32 %v411, %v483
      %v547 = vadd.f32 %v412, %v483
      %v548 = vadd.f32 %v413, %v483
      %v549 = vadd.f32 %v414, %v483
      %v550 = vadd.f32 %v415, %v483
      %v551 = vadd.f32 %v416, %v483
      %v552 = vadd.f32 %v417, %v483
      %v553 = vadd.f32 %v418, %v483
      %v554 = vadd.f32 %v419, %v483
      %v555 = vadd.f32 %v420, %v483
      %v556 = vadd.f32 %v421, %v483
      %v557 = vadd.f32 %v422, %v483
      %v558 = vadd.f32 %v423, %v483
      %v559 = vadd.f32 %v424, %v483
      %v560 = vadd.f32 %v425, %v483
      %v561 = vadd.f32 %v426, %v483
      %v562 = vadd.f32 %v427, %v483
      %v563 = vadd.f32 %v428, %v483
      %v564 = vadd.f32 %v429, %v483
      %v565 = vadd.f32 %v430, %v483
      %v566 = vadd.f32 %v431, %v483
      %v567 = vadd.f32 %v432, %v483
      %v568 = vadd.f32 %v433, %v483
      %v569 = vadd.f32 %v434, %v483
      %v570 = vadd.f32 %v435, %v483
      %v571 = vadd.f32 %v436, %v483
      %v572 = vadd.f32 %v437, %v483
      %v573 = vadd.f32 %v438, %v483
      %v574 = vadd.f32 %v439, %v483
      %v575 = vadd.f32 %v440, %v483
      %v576 = vadd.f32 %v441, %v483
      %v577 = vadd.f32 %v442, %v483
      %v578 = vadd.f32 %v443, %v483
      %v579 = vadd.f32 %v444, %v483
      %v580 = vadd.f32 %v445, %v483
      %v581 = vadd.f32 %v446, %v483
      %v582 = vadd.f32 %v447, %v483
      %v583 = vadd.f32 %v448, %v483
      %v584 = vadd.f32 %v449, %v483
      %v585 = vadd.f32 %v450, %v483
      %v586 = vadd.f32 %v451, %v483
      %v587 = vadd.f32 %v452, %v483
      %v588 = vadd.f32 %v453, %v483
      %v589 = vadd.f32 %v454, %v483
      %v590 = vadd.f32 %v455, %v483
      %v591 = vadd.f32 %v456, %v483
      %v592 = vadd.f32 %v457, %v483
      %v593 = vadd.f32 %v458, %v483
      %v594 = vadd.f32 %v459, %v483
      %v595 = vadd.f32 %v460, %v483
      %v596 = vadd.f32 %v461, %v483
      %v597 = vadd.f32 %v462, %v483
      %v598 = vadd.f32 %v463, %v483
      %v599 = vadd.f32 %v464, %v483
      %v600 = vadd.f32 %v465, %v483
      %v601 = vadd.f32 %v466, %v483
      %v602 = vadd.f32 %v467, %v483
      %v603 = vadd.f32 %v468, %v483
      %v604 = vadd.f32 %v469, %v483
      %v605 = vadd.f32 %v470, %v483
      %v606 = vadd.f32 %v471, %v483
      %v607 = vadd.f32 %v472, %v483
      %v608 = vadd.f32 %v473, %v483
      %v609 = vadd.f32 %v474, %v483
      %v610 = vadd.f32 %v475, %v483
      %v611 = vadd.f32 %v476, %v483
      %v612 = vadd.f32 %v477, %v483
      %v613 = vmax.f32 %v485, 0.0
      %v614 = vmax.f32 %v486, 0.0
      %v615 = vmax.f32 %v487, 0.0
      %v616 = vmax.f32 %v488, 0.0
      %v617 = vmax.f32 %v489, 0.0
      %v618 = vmax.f32 %v490, 0.0
      %v619 = vmax.f32 %v491, 0.0
      %v620 = vmax.f32 %v492, 0.0
      %v621 = vmax.f32 %v493, 0.0
      %v622 = vmax.f32 %v494, 0.0
      %v623 = vmax.f32 %v495, 0.0
      %v624 = vmax.f32 %v496, 0.0
      %v625 = vmax.f32 %v497, 0.0
      %v626 = vmax.f32 %v498, 0.0
      %v627 = vmax.f32 %v499, 0.0
      %v628 = vmax.f32 %v500, 0.0
      %v629 = vmax.f32 %v501, 0.0
      %v630 = vmax.f32 %v502, 0.0
      %v631 = vmax.f32 %v503, 0.0
      %v632 = vmax.f32 %v504, 0.0
      %v633 = vmax.f32 %v505, 0.0
      %v634 = vmax.f32 %v506, 0.0
      %v635 = vmax.f32 %v507, 0.0
      %v636 = vmax.f32 %v508, 0.0
      %v637 = vmax.f32 %v509, 0.0
      %v638 = vmax.f32 %v510, 0.0
      %v639 = vmax.f32 %v511, 0.0
      %v640 = vmax.f32 %v512, 0.0
      %v641 = vmax.f32 %v513, 0.0
      %v642 = vmax.f32 %v514, 0.0
      %v643 = vmax.f32 %v515, 0.0
      %v644 = vmax.f32 %v516, 0.0
      %v645 = vmax.f32 %v517, 0.0
      %v646 = vmax.f32 %v518, 0.0
      %v647 = vmax.f32 %v519, 0.0
      %v648 = vmax.f32 %v520, 0.0
      %v649 = vmax.f32 %v521, 0.0
      %v650 = vmax.f32 %v522, 0.0
      %v651 = vmax.f32 %v523, 0.0
      %v652 = vmax.f32 %v524, 0.0
      %v653 = vmax.f32 %v525, 0.0
      %v654 = vmax.f32 %v526, 0.0
      %v655 = vmax.f32 %v527, 0.0
      %v656 = vmax.f32 %v528, 0.0
      %v657 = vmax.f32 %v529, 0.0
      %v658 = vmax.f32 %v530, 0.0
      %v659 = vmax.f32 %v531, 0.0
      %v660 = vmax.f32 %v532, 0.0
      %v661 = vmax.f32 %v533, 0.0
      %v662 = vmax.f32 %v534, 0.0
      %v663 = vmax.f32 %v535, 0.0
      %v664 = vmax.f32 %v536, 0.0
      %v665 = vmax.f32 %v537, 0.0
      %v666 = vmax.f32 %v538, 0.0
      %v667 = vmax.f32 %v539, 0.0
      %v668 = vmax.f32 %v540, 0.0
      %v669 = vmax.f32 %v541, 0.0
      %v670 = vmax.f32 %v542, 0.0
      %v671 = vmax.f32 %v543, 0.0
      %v672 = vmax.f32 %v544, 0.0
      %v673 = vmax.f32 %v545, 0.0
      %v674 = vmax.f32 %v546, 0.0
      %v675 = vmax.f32 %v547, 0.0
      %v676 = vmax.f32 %v548, 0.0
      %v677 = vmax.f32 %v549, 0.0
      %v678 = vmax.f32 %v550, 0.0
      %v679 = vmax.f32 %v551, 0.0
      %v680 = vmax.f32 %v552, 0.0
      %v681 = vmax.f32 %v553, 0.0
      %v682 = vmax.f32 %v554, 0.0
      %v683 = vmax.f32 %v555, 0.0
      %v684 = vmax.f32 %v556, 0.0
      %v685 = vmax.f32 %v557, 0.0
      %v686 = vmax.f32 %v558, 0.0
      %v687 = vmax.f32 %v559, 0.0
      %v688 = vmax.f32 %v560, 0.0
      %v689 = vmax.f32 %v561, 0.0
      %v690 = vmax.f32 %v562, 0.0
      %v691 = vmax.f32 %v563, 0.0
      %v692 = vmax.f32 %v564, 0.0
      %v693 = vmax.f32 %v565, 0.0
      %v694 = vmax.f32 %v566, 0.0
      %v695 = vmax.f32 %v567, 0.0
      %v696 = vmax.f32 %v568, 0.0
      %v697 = vmax.f32 %v569, 0.0
      %v698 = vmax.f32 %v570, 0.0
      %v699 = vmax.f32 %v571, 0.0
      %v700 = vmax.f32 %v572, 0.0
      %v701 = vmax.f32 %v573, 0.0
      %v702 = vmax.f32 %v574, 0.0
      %v703 = vmax.f32 %v575, 0.0
      %v704 = vmax.f32 %v576, 0.0
      %v705 = vmax.f32 %v577, 0.0
      %v706 = vmax.f32 %v578, 0.0
      %v707 = vmax.f32 %v579, 0.0
      %v708 = vmax.f32 %v580, 0.0
      %v709 = vmax.f32 %v581, 0.0
      %v710 = vmax.f32 %v582, 0.0
      %v711 = vmax.f32 %v583, 0.0
      %v712 = vmax.f32 %v584, 0.0
      %v713 = vmax.f32 %v585, 0.0
      %v714 = vmax.f32 %v586, 0.0
      %v715 = vmax.f32 %v587, 0.0
      %v716 = vmax.f32 %v588, 0.0
      %v717 = vmax.f32 %v589, 0.0
      %v718 = vmax.f32 %v590, 0.0
      %v719 = vmax.f32 %v591, 0.0
      %v720 = vmax.f32 %v592, 0.0
      %v721 = vmax.f32 %v593, 0.0
      %v722 = vmax.f32 %v594, 0.0
      %v723 = vmax.f32 %v595, 0.0
      %v724 = vmax.f32 %v596, 0.0
      %v725 = vmax.f32 %v597, 0.0
      %v726 = vmax.f32 %v598, 0.0
      %v727 = vmax.f32 %v599, 0.0
      %v728 = vmax.f32 %v600, 0.0
      %v729 = vmax.f32 %v601, 0.0
      %v730 = vmax.f32 %v602, 0.0
      %v731 = vmax.f32 %v603, 0.0
      %v732 = vmax.f32 %v604, 0.0
      %v733 = vmax.f32 %v605, 0.0
      %v734 = vmax.f32 %v606, 0.0
      %v735 = vmax.f32 %v607, 0.0
      %v736 = vmax.f32 %v608, 0.0
      %v737 = vmax.f32 %v609, 0.0
      %v738 = vmax.f32 %v610, 0.0
      %v739 = vmax.f32 %v611, 0.0
      %v740 = vmax.f32 %v612, 0.0
      %vm741 = vcmask 64512
      %742 = vst.msk [vmem:[%s213] sm:$0xff] %vm741, %v613
      %743 = vst.msk [vmem:[%s213 + $0x8] sm:$0xff] %vm741, %v614
      %744 = vst.msk [vmem:[%s213 + $0x10] sm:$0xff] %vm741, %v615
      %745 = vst.msk [vmem:[%s213 + $0x18] sm:$0xff] %vm741, %v616
      %746 = vst.msk [vmem:[%s213 + $0x20] sm:$0xff] %vm741, %v617
      %747 = vst.msk [vmem:[%s213 + $0x28] sm:$0xff] %vm741, %v618
      %748 = vst.msk [vmem:[%s213 + $0x30] sm:$0xff] %vm741, %v619
      %749 = vst.msk [vmem:[%s213 + $0x38] sm:$0xff] %vm741, %v620
      %750 = vst.msk [vmem:[%s213 + $0x40] sm:$0xff] %vm741, %v621
      %751 = vst.msk [vmem:[%s213 + $0x48] sm:$0xff] %vm741, %v622
      %752 = vst.msk [vmem:[%s213 + $0x50] sm:$0xff] %vm741, %v623
      %753 = vst.msk [vmem:[%s213 + $0x58] sm:$0xff] %vm741, %v624
      %754 = vst.msk [vmem:[%s213 + $0x60] sm:$0xff] %vm741, %v625
      %755 = vst.msk [vmem:[%s213 + $0x68] sm:$0xff] %vm741, %v626
      %756 = vst.msk [vmem:[%s213 + $0x70] sm:$0xff] %vm741, %v627
      %757 = vst.msk [vmem:[%s213 + $0x78] sm:$0xff] %vm741, %v628
      %758 = vst.msk [vmem:[%s213 + $0x80] sm:$0xff] %vm741, %v629
      %759 = vst.msk [vmem:[%s213 + $0x88] sm:$0xff] %vm741, %v630
      %760 = vst.msk [vmem:[%s213 + $0x90] sm:$0xff] %vm741, %v631
      %761 = vst.msk [vmem:[%s213 + $0x98] sm:$0xff] %vm741, %v632
      %762 = vst.msk [vmem:[%s213 + $0xa0] sm:$0xff] %vm741, %v633
      %763 = vst.msk [vmem:[%s213 + $0xa8] sm:$0xff] %vm741, %v634
      %764 = vst.msk [vmem:[%s213 + $0xb0] sm:$0xff] %vm741, %v635
      %765 = vst.msk [vmem:[%s213 + $0xb8] sm:$0xff] %vm741, %v636
      %766 = vst.msk [vmem:[%s213 + $0xc0] sm:$0xff] %vm741, %v637
      %767 = vst.msk [vmem:[%s213 + $0xc8] sm:$0xff] %vm741, %v638
      %768 = vst.msk [vmem:[%s213 + $0xd0] sm:$0xff] %vm741, %v639
      %769 = vst.msk [vmem:[%s213 + $0xd8] sm:$0xff] %vm741, %v640
      %770 = vst.msk [vmem:[%s213 + $0xe0] sm:$0xff] %vm741, %v641
      %771 = vst.msk [vmem:[%s213 + $0xe8] sm:$0xff] %vm741, %v642
      %772 = vst.msk [vmem:[%s213 + $0xf0] sm:$0xff] %vm741, %v643
      %773 = vst.msk [vmem:[%s213 + $0xf8] sm:$0xff] %vm741, %v644
      %774 = vst.msk [vmem:[%s213 + $0x100] sm:$0xff] %vm741, %v645
      %775 = vst.msk [vmem:[%s213 + $0x108] sm:$0xff] %vm741, %v646
      %776 = vst.msk [vmem:[%s213 + $0x110] sm:$0xff] %vm741, %v647
      %777 = vst.msk [vmem:[%s213 + $0x118] sm:$0xff] %vm741, %v648
      %778 = vst.msk [vmem:[%s213 + $0x120] sm:$0xff] %vm741, %v649
      %779 = vst.msk [vmem:[%s213 + $0x128] sm:$0xff] %vm741, %v650
      %780 = vst.msk [vmem:[%s213 + $0x130] sm:$0xff] %vm741, %v651
      %781 = vst.msk [vmem:[%s213 + $0x138] sm:$0xff] %vm741, %v652
      %782 = vst.msk [vmem:[%s213 + $0x140] sm:$0xff] %vm741, %v653
      %783 = vst.msk [vmem:[%s213 + $0x148] sm:$0xff] %vm741, %v654
      %784 = vst.msk [vmem:[%s213 + $0x150] sm:$0xff] %vm741, %v655
      %785 = vst.msk [vmem:[%s213 + $0x158] sm:$0xff] %vm741, %v656
      %786 = vst.msk [vmem:[%s213 + $0x160] sm:$0xff] %vm741, %v657
      %787 = vst.msk [vmem:[%s213 + $0x168] sm:$0xff] %vm741, %v658
      %788 = vst.msk [vmem:[%s213 + $0x170] sm:$0xff] %vm741, %v659
      %789 = vst.msk [vmem:[%s213 + $0x178] sm:$0xff] %vm741, %v660
      %790 = vst.msk [vmem:[%s213 + $0x180] sm:$0xff] %vm741, %v661
      %791 = vst.msk [vmem:[%s213 + $0x188] sm:$0xff] %vm741, %v662
      %792 = vst.msk [vmem:[%s213 + $0x190] sm:$0xff] %vm741, %v663
      %793 = vst.msk [vmem:[%s213 + $0x198] sm:$0xff] %vm741, %v664
      %794 = vst.msk [vmem:[%s213 + $0x1a0] sm:$0xff] %vm741, %v665
      %795 = vst.msk [vmem:[%s213 + $0x1a8] sm:$0xff] %vm741, %v666
      %796 = vst.msk [vmem:[%s213 + $0x1b0] sm:$0xff] %vm741, %v667
      %797 = vst.msk [vmem:[%s213 + $0x1b8] sm:$0xff] %vm741, %v668
      %798 = vst.msk [vmem:[%s213 + $0x1c0] sm:$0xff] %vm741, %v669
      %799 = vst.msk [vmem:[%s213 + $0x1c8] sm:$0xff] %vm741, %v670
      %800 = vst.msk [vmem:[%s213 + $0x1d0] sm:$0xff] %vm741, %v671
      %801 = vst.msk [vmem:[%s213 + $0x1d8] sm:$0xff] %vm741, %v672
      %802 = vst.msk [vmem:[%s213 + $0x1e0] sm:$0xff] %vm741, %v673
      %803 = vst.msk [vmem:[%s213 + $0x1e8] sm:$0xff] %vm741, %v674
      %804 = vst.msk [vmem:[%s213 + $0x1f0] sm:$0xff] %vm741, %v675
      %805 = vst.msk [vmem:[%s213 + $0x1f8] sm:$0xff] %vm741, %v676
      %806 = vst.msk [vmem:[%s213 + $0x200] sm:$0xff] %vm741, %v677
      %807 = vst.msk [vmem:[%s213 + $0x208] sm:$0xff] %vm741, %v678
      %808 = vst.msk [vmem:[%s213 + $0x210] sm:$0xff] %vm741, %v679
      %809 = vst.msk [vmem:[%s213 + $0x218] sm:$0xff] %vm741, %v680
      %810 = vst.msk [vmem:[%s213 + $0x220] sm:$0xff] %vm741, %v681
      %811 = vst.msk [vmem:[%s213 + $0x228] sm:$0xff] %vm741, %v682
      %812 = vst.msk [vmem:[%s213 + $0x230] sm:$0xff] %vm741, %v683
      %813 = vst.msk [vmem:[%s213 + $0x238] sm:$0xff] %vm741, %v684
      %814 = vst.msk [vmem:[%s213 + $0x240] sm:$0xff] %vm741, %v685
      %815 = vst.msk [vmem:[%s213 + $0x248] sm:$0xff] %vm741, %v686
      %816 = vst.msk [vmem:[%s213 + $0x250] sm:$0xff] %vm741, %v687
      %817 = vst.msk [vmem:[%s213 + $0x258] sm:$0xff] %vm741, %v688
      %818 = vst.msk [vmem:[%s213 + $0x260] sm:$0xff] %vm741, %v689
      %819 = vst.msk [vmem:[%s213 + $0x268] sm:$0xff] %vm741, %v690
      %820 = vst.msk [vmem:[%s213 + $0x270] sm:$0xff] %vm741, %v691
      %821 = vst.msk [vmem:[%s213 + $0x278] sm:$0xff] %vm741, %v692
      %822 = vst.msk [vmem:[%s213 + $0x280] sm:$0xff] %vm741, %v693
      %823 = vst.msk [vmem:[%s213 + $0x288] sm:$0xff] %vm741, %v694
      %824 = vst.msk [vmem:[%s213 + $0x290] sm:$0xff] %vm741, %v695
      %825 = vst.msk [vmem:[%s213 + $0x298] sm:$0xff] %vm741, %v696
      %826 = vst.msk [vmem:[%s213 + $0x2a0] sm:$0xff] %vm741, %v697
      %827 = vst.msk [vmem:[%s213 + $0x2a8] sm:$0xff] %vm741, %v698
      %828 = vst.msk [vmem:[%s213 + $0x2b0] sm:$0xff] %vm741, %v699
      %829 = vst.msk [vmem:[%s213 + $0x2b8] sm:$0xff] %vm741, %v700
      %830 = vst.msk [vmem:[%s213 + $0x2c0] sm:$0xff] %vm741, %v701
      %831 = vst.msk [vmem:[%s213 + $0x2c8] sm:$0xff] %vm741, %v702
      %832 = vst.msk [vmem:[%s213 + $0x2d0] sm:$0xff] %vm741, %v703
      %833 = vst.msk [vmem:[%s213 + $0x2d8] sm:$0xff] %vm741, %v704
      %834 = vst.msk [vmem:[%s213 + $0x2e0] sm:$0xff] %vm741, %v705
      %835 = vst.msk [vmem:[%s213 + $0x2e8] sm:$0xff] %vm741, %v706
      %836 = vst.msk [vmem:[%s213 + $0x2f0] sm:$0xff] %vm741, %v707
      %837 = vst.msk [vmem:[%s213 + $0x2f8] sm:$0xff] %vm741, %v708
      %838 = vst.msk [vmem:[%s213 + $0x300] sm:$0xff] %vm741, %v709
      %839 = vst.msk [vmem:[%s213 + $0x308] sm:$0xff] %vm741, %v710
      %840 = vst.msk [vmem:[%s213 + $0x310] sm:$0xff] %vm741, %v711
      %841 = vst.msk [vmem:[%s213 + $0x318] sm:$0xff] %vm741, %v712
      %842 = vst.msk [vmem:[%s213 + $0x320] sm:$0xff] %vm741, %v713
      %843 = vst.msk [vmem:[%s213 + $0x328] sm:$0xff] %vm741, %v714
      %844 = vst.msk [vmem:[%s213 + $0x330] sm:$0xff] %vm741, %v715
      %845 = vst.msk [vmem:[%s213 + $0x338] sm:$0xff] %vm741, %v716
      %846 = vst.msk [vmem:[%s213 + $0x340] sm:$0xff] %vm741, %v717
      %847 = vst.msk [vmem:[%s213 + $0x348] sm:$0xff] %vm741, %v718
      %848 = vst.msk [vmem:[%s213 + $0x350] sm:$0xff] %vm741, %v719
      %849 = vst.msk [vmem:[%s213 + $0x358] sm:$0xff] %vm741, %v720
      %850 = vst.msk [vmem:[%s213 + $0x360] sm:$0xff] %vm741, %v721
      %851 = vst.msk [vmem:[%s213 + $0x368] sm:$0xff] %vm741, %v722
      %852 = vst.msk [vmem:[%s213 + $0x370] sm:$0xff] %vm741, %v723
      %853 = vst.msk [vmem:[%s213 + $0x378] sm:$0xff] %vm741, %v724
      %854 = vst.msk [vmem:[%s213 + $0x380] sm:$0xff] %vm741, %v725
      %855 = vst.msk [vmem:[%s213 + $0x388] sm:$0xff] %vm741, %v726
      %856 = vst.msk [vmem:[%s213 + $0x390] sm:$0xff] %vm741, %v727
      %857 = vst.msk [vmem:[%s213 + $0x398] sm:$0xff] %vm741, %v728
      %858 = vst.msk [vmem:[%s213 + $0x3a0] sm:$0xff] %vm741, %v729
      %859 = vst.msk [vmem:[%s213 + $0x3a8] sm:$0xff] %vm741, %v730
      %860 = vst.msk [vmem:[%s213 + $0x3b0] sm:$0xff] %vm741, %v731
      %861 = vst.msk [vmem:[%s213 + $0x3b8] sm:$0xff] %vm741, %v732
      %862 = vst.msk [vmem:[%s213 + $0x3c0] sm:$0xff] %vm741, %v733
      %863 = vst.msk [vmem:[%s213 + $0x3c8] sm:$0xff] %vm741, %v734
      %864 = vst.msk [vmem:[%s213 + $0x3d0] sm:$0xff] %vm741, %v735
      %865 = vst.msk [vmem:[%s213 + $0x3d8] sm:$0xff] %vm741, %v736
      %866 = vst.msk [vmem:[%s213 + $0x3e0] sm:$0xff] %vm741, %v737
      %867 = vst.msk [vmem:[%s213 + $0x3e8] sm:$0xff] %vm741, %v738
      %868 = vst.msk [vmem:[%s213 + $0x3f0] sm:$0xff] %vm741, %v739
      %869 = vst.msk [vmem:[%s213 + $0x3f8] sm:$0xff] %vm741, %v740
      %s870 = smul.u32 32, %s19
      %p871 = scmp.lt.s32.totalorder %s18, 1
      %s872 = scalar_select %p871, %s18, 1
      %p873 = scmp.lt.s32.totalorder %s870, 31
      %s874 = scalar_select %p873, %s870, 31
      %s875 = smul.addr %s874, 4
      %s876 = smul.addr %s872, 128
      %s877 = sadd.s32 %s875, %s876
      %s878 = smul.addr %s877, 8
      %s879 = scalar_lea.vmem %s3, %s878
      // Predicated region
      $region33: #{upconv_forward.3} parent=31 // pred_check
        %p880 = pneg %p116
      $region34: #{upconv_forward.3} parent=31 // pred_check_branch
        %882 = sbr.rel (%p880) target = $region36
      $region35: #{upconv_forward.3} parent=31 // pred_region
        %s883 = smul.u32 32, %s19
      $region36: #{upconv_forward.3} parent=31 // pred_fallthru
        _
    $region32: #{upconv_forward.3} parent=5 // pred_fallthru
      _
    %p884 = scmp.le.s32.totalorder 2, %s9
    // Predicated region
    $region37: #{upconv_forward.3} parent=5 // pred_check
      %p885 = pneg %p884
    $region38: #{upconv_forward.3} parent=5 // pred_check_branch
      %887 = sbr.rel (%p885) target = $region40
    $region39: #{upconv_forward.3} parent=5 // pred_region
      %s888 = ssub.s32 %s9, 2
      // Predicated region
      $region41: #{upconv_forward.3} parent=39 // pred_check
        %p889 = pneg %p122
      $region42: #{upconv_forward.3} parent=39 // pred_check_branch
        %891 = sbr.rel (%p889) target = $region44
      $region43: #{upconv_forward.3} parent=39 // pred_region
        %s892 = smul.u32 32, %s21
        %p893 = scmp.lt.s32.totalorder %s20, 1
        %s894 = scalar_select %p893, %s20, 1
        %p895 = scmp.lt.s32.totalorder %s892, 31
        %s896 = scalar_select %p895, %s892, 31
        %s897 = smul.addr %s896, 4
        %s898 = smul.addr %s894, 128
        %s899 = sadd.s32 %s897, %s898
        %s900 = smul.addr %s899, 8
        %s901 = scalar_lea.vmem %s3, %s900
      $region44: #{upconv_forward.3} parent=39 // pred_fallthru
        _
    $region40: #{upconv_forward.3} parent=5 // pred_fallthru
      _
  $region6: #{upconv_forward.3} parent=0 // loop_footer
    %s13 = sadd.s32 1, %s9
  $region7: #{upconv_forward.3} parent=0 // loop_footer_branch
    %8 = sbr.rel target = $region3
  $region8: #{upconv_forward.3} parent=0 // loop_exit
    _

// kernel: upconv_forward.2
$region0: #{upconv_forward.2}
  #allocation0 [shape = 'u32[]', space=smem, size = 0x4, offset = 0x4, fixed_abs, tag = 'smem constant byte address 0x4 - core index']
  #allocation1 [shape = 'u32[144,128]{1,0:T(1,128)}', space=vmem, size = 0x12000, scoped, tag = 'internal scratch']
  %s0 = inlined_call_operand.vmem [shape: bf16[2,17,17,4], index: 0, kind: input, shape index: {}]
  %s1 = inlined_call_operand.vmem [shape: bf16[16,16], index: 1, kind: input, shape index: {}]
  %s2 = inlined_call_operand.vmem [shape: bf16[16,16], index: 2, kind: input, shape index: {}]
  %s3 = inlined_call_operand.vmem [shape: f32[2,16,2,16,16], index: 3, kind: output, shape index: {0}]
  %s4 = inlined_call_operand.vmem [shape: f32[2,1,2,8], index: 4, kind: output, shape index: {1}]
  %5 = xla_tuple %s3, %s4
  %s6 = sld [smem:[#allocation0]]
  $region53: #{upconv_forward.2} parent=0
    _
  %s8 = ssub.s32 1, %s6
  %s9 = scalar_select 0, %s8, %s6
  loop: start=0, step=1, limit=4
  $region2: #{upconv_forward.2} parent=0 // loop_pre_header
    _
  $region3: #{upconv_forward.2} parent=0 // loop_header
    %s11 = sphi 0, %s15
    %p12 = scmp.ge.s32.totalorder %s11, 4
    %s18 = sphi 0, %s30
    %s19 = sphi 0, %s26
    %s20 = sphi 0, %s18
    %s21 = sphi 0, %s19
    %s22 = sphi 0, %s20
    %s23 = sphi 0, %s21
    %s33 = sphi 0, %s35
    %s36 = sphi 0, %s33
    %s37 = sphi 0, %s36
    %s53 = sphi 0, %s37
    %s57 = sphi 0, %s57
    %s59 = sphi 0, %s57
    %s60 = sphi 0, %s59
    %s74 = sphi 0, %s60
    %s78 = sphi 0, %s78
    %s80 = sphi 0, %s78
    %s81 = sphi 0, %s80
    %s95 = sphi 0, %s81
    %s103 = sphi 0, %s105
    %s106 = sphi 0, %s103
    %s107 = sphi 0, %s106
    %s123 = sphi 0, %s107
    %s131 = sphi 0, %s133
    %s134 = sphi 0, %s131
    %s135 = sphi 0, %s134
    %s151 = sphi 0, %s135
  $region4: #{upconv_forward.2} parent=0 // loop_header_branch
    %14 = sbr.rel (%p12) target = $region8
  $region5: #{upconv_forward.2} parent=0 // loop_body
    %s16 = ssub.s32 %s11, 1
    %s17 = ssub.s32 %s11, 2
    %s24 = sadd.s32 1, %s19
    %p25 = scmp.ge.s32.totalorder %s24, 1
    %s26 = scalar_select %p25, 0, %s24
    %s27 = sadd.s32 1, %s18
    %s28 = scalar_select %p25, %s27, %s18
    %p29 = scmp.ge.s32.totalorder %s28, 2
    %s30 = scalar_select %p29, 0, %s28
    %s31 = ssub.s32 %s18, %s30
    %p32 = scmp.eq.s32.totalorder %s31, 0
    %s34 = sadd.s32 %s33, 1
    %s35 = scalar_select %p32, %s33, %s34
    %p38 = pneg %p32
    %p39 = scmp.eq.s32.totalorder %s11, 1
    %p40 = por %p38, %p39
    %p41 = scmp.ne.s32.totalorder %s33, %s36
    %p42 = scmp.eq.s32.totalorder %s11, 0
    %p43 = por %p41, %p42
    %p44 = scmp.ne.s32.totalorder %s33, %s36
    %p45 = scmp.eq.s32.totalorder %s16, 1
    %p46 = por %p44, %p45
    %p47 = scmp.ne.s32.totalorder %s36, %s37
    %p48 = scmp.eq.s32.totalorder %s16, 0
    %p49 = por %p47, %p48
    %p50 = scmp.ne.s32.totalorder %s36, %s37
    %p51 = scmp.eq.s32.totalorder %s17, 1
    %p52 = por %p50, %p51
    %p54 = scmp.ne.s32.totalorder %s37, %s53
    %p55 = scmp.eq.s32.totalorder %s17, 0
    %p56 = por %p54, %p55
    %s58 = sadd.s32 %s57, 1
    %p61 = scmp.eq.s32.totalorder %s11, 1
    %p62 = scmp.ne.s32.totalorder %s57, %s59
    %p63 = scmp.eq.s32.totalorder %s11, 0
    %p64 = por %p62, %p63
    %p65 = scmp.ne.s32.totalorder %s57, %s59
    %p66 = scmp.eq.s32.totalorder %s16, 1
    %p67 = por %p65, %p66
    %p68 = scmp.ne.s32.totalorder %s59, %s60
    %p69 = scmp.eq.s32.totalorder %s16, 0
    %p70 = por %p68, %p69
    %p71 = scmp.ne.s32.totalorder %s59, %s60
    %p72 = scmp.eq.s32.totalorder %s17, 1
    %p73 = por %p71, %p72
    %p75 = scmp.ne.s32.totalorder %s60, %s74
    %p76 = scmp.eq.s32.totalorder %s17, 0
    %p77 = por %p75, %p76
    %s79 = sadd.s32 %s78, 1
    %p82 = scmp.eq.s32.totalorder %s11, 1
    %p83 = scmp.ne.s32.totalorder %s78, %s80
    %p84 = scmp.eq.s32.totalorder %s11, 0
    %p85 = por %p83, %p84
    %p86 = scmp.ne.s32.totalorder %s78, %s80
    %p87 = scmp.eq.s32.totalorder %s16, 1
    %p88 = por %p86, %p87
    %p89 = scmp.ne.s32.totalorder %s80, %s81
    %p90 = scmp.eq.s32.totalorder %s16, 0
    %p91 = por %p89, %p90
    %p92 = scmp.ne.s32.totalorder %s80, %s81
    %p93 = scmp.eq.s32.totalorder %s17, 1
    %p94 = por %p92, %p93
    %p96 = scmp.ne.s32.totalorder %s81, %s95
    %p97 = scmp.eq.s32.totalorder %s17, 0
    %p98 = por %p96, %p97
    %s99 = ssub.s32 %s18, %s30
    %s100 = ssub.s32 %s19, %s26
    %s101 = sor.u32 %s99, %s100
    %p102 = scmp.eq.s32.totalorder %s101, 0
    %s104 = sadd.s32 %s103, 1
    %s105 = scalar_select %p102, %s103, %s104
    %p108 = pneg %p102
    %p109 = scmp.eq.s32.totalorder %s11, 1
    %p110 = por %p108, %p109
    %p111 = scmp.ne.s32.totalorder %s103, %s106
    %p112 = scmp.eq.s32.totalorder %s11, 0
    %p113 = por %p111, %p112
    %p114 = scmp.ne.s32.totalorder %s103, %s106
    %p115 = scmp.eq.s32.totalorder %s16, 1
    %p116 = por %p114, %p115
    %p117 = scmp.ne.s32.totalorder %s106, %s107
    %p118 = scmp.eq.s32.totalorder %s16, 0
    %p119 = por %p117, %p118
    %p120 = scmp.ne.s32.totalorder %s106, %s107
    %p121 = scmp.eq.s32.totalorder %s17, 1
    %p122 = por %p120, %p121
    %p124 = scmp.ne.s32.totalorder %s107, %s123
    %p125 = scmp.eq.s32.totalorder %s17, 0
    %p126 = por %p124, %p125
    %s127 = ssub.s32 %s18, %s30
    %s128 = ssub.s32 %s19, %s26
    %s129 = sor.u32 %s127, %s128
    %p130 = scmp.eq.s32.totalorder %s129, 0
    %s132 = sadd.s32 %s131, 1
    %s133 = scalar_select %p130, %s131, %s132
    %p136 = pneg %p130
    %p137 = scmp.eq.s32.totalorder %s11, 1
    %p138 = por %p136, %p137
    %p139 = scmp.ne.s32.totalorder %s131, %s134
    %p140 = scmp.eq.s32.totalorder %s11, 0
    %p141 = por %p139, %p140
    %p142 = scmp.ne.s32.totalorder %s131, %s134
    %p143 = scmp.eq.s32.totalorder %s16, 1
    %p144 = por %p142, %p143
    %p145 = scmp.ne.s32.totalorder %s134, %s135
    %p146 = scmp.eq.s32.totalorder %s16, 0
    %p147 = por %p145, %p146
    %p148 = scmp.ne.s32.totalorder %s134, %s135
    %p149 = scmp.eq.s32.totalorder %s17, 1
    %p150 = por %p148, %p149
    %p152 = scmp.ne.s32.totalorder %s135, %s151
    %p153 = scmp.eq.s32.totalorder %s17, 0
    %p154 = por %p152, %p153
    %p155 = scmp.le.s32.totalorder 1, %s11
    %p156 = scmp.lt.s32.totalorder %s11, 3
    %p157 = pnand %p155, %p156
    %p158 = pneg %p157
    // Predicated region
    $region9: #{upconv_forward.2} parent=5 // pred_check
      _
    $region10: #{upconv_forward.2} parent=5 // pred_check_branch
      %160 = sbr.rel (%p157) target = $region12
    $region11: #{upconv_forward.2} parent=5 // pred_region
      %s161 = ssub.s32 %s11, 1
      // Predicated region
      $region13: #{upconv_forward.2} parent=11 // pred_check
        %p162 = pneg %p70
      $region14: #{upconv_forward.2} parent=11 // pred_check_branch
        %164 = sbr.rel (%p162) target = $region16
      $region15: #{upconv_forward.2} parent=11 // pred_region
        _
      $region16: #{upconv_forward.2} parent=11 // pred_fallthru
        _
      // Predicated region
      $region17: #{upconv_forward.2} parent=11 // pred_check
        %p165 = pneg %p91
      $region18: #{upconv_forward.2} parent=11 // pred_check_branch
        %167 = sbr.rel (%p165) target = $region20
      $region19: #{upconv_forward.2} parent=11 // pred_region
        _
      $region20: #{upconv_forward.2} parent=11 // pred_fallthru
        _
    $region12: #{upconv_forward.2} parent=5 // pred_fallthru
      _
    %p168 = scmp.lt.s32.totalorder %s11, 2
    // Predicated region
    $region21: #{upconv_forward.2} parent=5 // pred_check
      %p169 = pneg %p168
    $region22: #{upconv_forward.2} parent=5 // pred_check_branch
      %171 = sbr.rel (%p169) target = $region24
    $region23: #{upconv_forward.2} parent=5 // pred_region
      // Predicated region
      $region25: #{upconv_forward.2} parent=23 // pred_check
        %p172 = pneg %p43
      $region26: #{upconv_forward.2} parent=23 // pred_check_branch
        %174 = sbr.rel (%p172) target = $region28
      $region27: #{upconv_forward.2} parent=23 // pred_region
        %p175 = scmp.lt.s32.totalorder %s18, 1
        %s176 = scalar_select %p175, %s18, 1
        %s177 = smul.addr %s176, 51
        %s178 = smul.addr %s177, 4
        %s179 = scalar_lea.vmem %s0, %s178
      $region28: #{upconv_forward.2} parent=23 // pred_fallthru
        _
    $region24: #{upconv_forward.2} parent=5 // pred_fallthru
      _
    %p180 = scmp.le.s32.totalorder 1, %s11
    %p181 = scmp.lt.s32.totalorder %s11, 3
    %p182 = pnand %p180, %p181
    %p183 = pneg %p182
    // Predicated region
    $region29: #{upconv_forward.2} parent=5 // pred_check
      _
    $region30: #{upconv_forward.2} parent=5 // pred_check_branch
      %185 = sbr.rel (%p182) target = $region32
    $region31: #{upconv_forward.2} parent=5 // pred_region
      %s186 = ssub.s32 %s11, 1
      %p187 = scmp.lt.s32.totalorder %s20, 1
      %s188 = scalar_select %p187, %s20, 1
      %s189 = smul.addr %s188, 51
      %s190 = smul.addr %s189, 4
      %s191 = scalar_lea.vmem %s0, %s190
      %p192 = pneg %p49
      %p193 = pneg %p46
      %p194 = pneg %p70
      %p195 = pneg %p67
      %p196 = pneg %p91
      %p197 = pneg %p88
      %p198 = pneg %p119
      %p199 = pneg %p116
      %s200 = smul.u32 16, %s21
      %p201 = scmp.lt.s32.totalorder %s20, 1
      %s202 = scalar_select %p201, %s20, 1
      %p203 = scmp.lt.s32.totalorder %s200, 15
      %s204 = scalar_select %p203, %s200, 15
      %s205 = smul.addr %s204, 4
      %s206 = smul.addr %s202, 64
      %s207 = sadd.s32 %s205, %s206
      %s208 = smul.addr %s207, 8
      %s209 = scalar_lea.vmem %s3, %s208
      %p210 = pneg %p147
      %p211 = pneg %p144
      %p212 = scmp.lt.s32.totalorder %s20, 1
      %s213 = scalar_select %p212, %s20, 1
      %p214 = scmp.lt.s32.totalorder %s21, 0
      %s215 = scalar_select %p214, %s21, 0
      %s216 = sadd.s32 %s215, %s213
      %s217 = smul.addr %s216, 2
      %s218 = scalar_lea.vmem %s4, %s217
      %p219 = scmp.lt.s32.totalorder %s20, 1
      %s220 = scalar_select %p219, %s20, 1
      %s221 = smul.addr %s220, 51
      %s222 = smul.addr %s221, 4
      %s223 = scalar_lea.vmem %s0, %s222
      %s224 = smul.u32 16, %s21
      %p225 = scmp.lt.s32.totalorder %s20, 1
      %s226 = scalar_select %p225, %s20, 1
      %p227 = scmp.lt.s32.totalorder %s224, 15
      %s228 = scalar_select %p227, %s224, 15
      %s229 = smul.addr %s228, 4
      %s230 = smul.addr %s226, 64
      %s231 = sadd.s32 %s229, %s230
      %s232 = smul.addr %s231, 8
      %s233 = scalar_lea.vmem %s3, %s232
      %s234 = smul.u32 16, %s21
      %p235 = scmp.lt.s32.totalorder %s20, 1
      %s236 = scalar_select %p235, %s20, 1
      %p237 = scmp.lt.s32.totalorder %s21, 0
      %s238 = scalar_select %p237, %s21, 0
      %s239 = sadd.s32 %s238, %s236
      %s240 = smul.addr %s239, 2
      %s241 = scalar_lea.vmem %s4, %s240
      %s243 = smul.u32 %s21, 16
      %s244 = smul.u32 %s243, 3
      %s245 = smul.addr %s244, 4
      %s246 = scalar_lea.vmem %s223, %s245
      %v247 = vld [vmem:[%s246] sm:$0xf]
      %v248 = vld [vmem:[%s246 + $0x4] sm:$0xf]
      %v249 = vld [vmem:[%s246 + $0x8] sm:$0x1]
      %v250 = vld [vmem:[%s246 + $0xc] sm:$0xf]
      %v251 = vld [vmem:[%s246 + $0x10] sm:$0xf]
      %v252 = vld [vmem:[%s246 + $0x14] sm:$0x1]
      %v253 = vld [vmem:[%s246 + $0x18] sm:$0xf]
      %v254 = vld [vmem:[%s246 + $0x1c] sm:$0xf]
      %v255 = vld [vmem:[%s246 + $0x20] sm:$0x1]
      %v256 = vld [vmem:[%s246 + $0x24] sm:$0xf]
      %v257 = vld [vmem:[%s246 + $0x28] sm:$0xf]
      %v258 = vld [vmem:[%s246 + $0x2c] sm:$0x1]
      %v259 = vld [vmem:[%s246 + $0x30] sm:$0xf]
      %v260 = vld [vmem:[%s246 + $0x34] sm:$0xf]
      %v261 = vld [vmem:[%s246 + $0x38] sm:$0x1]
      %v262 = vld [vmem:[%s246 + $0x3c] sm:$0xf]
      %v263 = vld [vmem:[%s246 + $0x40] sm:$0xf]
      %v264 = vld [vmem:[%s246 + $0x44] sm:$0x1]
      %v265 = vld [vmem:[%s246 + $0x48] sm:$0xf]
      %v266 = vld [vmem:[%s246 + $0x4c] sm:$0xf]
      %v267 = vld [vmem:[%s246 + $0x50] sm:$0x1]
      %v268 = vld [vmem:[%s246 + $0x54] sm:$0xf]
      %v269 = vld [vmem:[%s246 + $0x58] sm:$0xf]
      %v270 = vld [vmem:[%s246 + $0x5c] sm:$0x1]
      %v271 = vld [vmem:[%s246 + $0x60] sm:$0xf]
      %v272 = vld [vmem:[%s246 + $0x64] sm:$0xf]
      %v273 = vld [vmem:[%s246 + $0x68] sm:$0x1]
      %v274 = vld [vmem:[%s246 + $0x6c] sm:$0xf]
      %v275 = vld [vmem:[%s246 + $0x70] sm:$0xf]
      %v276 = vld [vmem:[%s246 + $0x74] sm:$0x1]
      %v277 = vld [vmem:[%s246 + $0x78] sm:$0xf]
      %v278 = vld [vmem:[%s246 + $0x7c] sm:$0xf]
      %v279 = vld [vmem:[%s246 + $0x80] sm:$0x1]
      %v280 = vld [vmem:[%s246 + $0x84] sm:$0xf]
      %v281 = vld [vmem:[%s246 + $0x88] sm:$0xf]
      %v282 = vld [vmem:[%s246 + $0x8c] sm:$0x1]
      %v283 = vld [vmem:[%s246 + $0x90] sm:$0xf]
      %v284 = vld [vmem:[%s246 + $0x94] sm:$0xf]
      %v285 = vld [vmem:[%s246 + $0x98] sm:$0x1]
      %v286 = vld [vmem:[%s246 + $0x9c] sm:$0xf]
      %v287 = vld [vmem:[%s246 + $0xa0] sm:$0xf]
      %v288 = vld [vmem:[%s246 + $0xa4] sm:$0x1]
      %v289 = vld [vmem:[%s246 + $0xa8] sm:$0xf]
      %v290 = vld [vmem:[%s246 + $0xac] sm:$0xf]
      %v291 = vld [vmem:[%s246 + $0xb0] sm:$0x1]
      %v292 = vld [vmem:[%s246 + $0xb4] sm:$0xf]
      %v293 = vld [vmem:[%s246 + $0xb8] sm:$0xf]
      %v294 = vld [vmem:[%s246 + $0xbc] sm:$0x1]
      %v295 = vld [vmem:[%s246 + $0xc0] sm:$0xf]
      %v296 = vld [vmem:[%s246 + $0xc4] sm:$0xf]
      %v297 = vld [vmem:[%s246 + $0xc8] sm:$0x1]
      %v330 = vunpack.c.l.b16 %v247
      %v331 = vunpack.c.l.b16 %v248
      %v332 = vunpack.c.l.b16 %v250
      %v333 = vunpack.c.l.b16 %v251
      %v334 = vunpack.c.l.b16 %v253
      %v335 = vunpack.c.l.b16 %v254
      %v336 = vunpack.c.l.b16 %v256
      %v337 = vunpack.c.l.b16 %v257
      %v338 = vunpack.c.l.b16 %v259
      %v339 = vunpack.c.l.b16 %v260
      %v340 = vunpack.c.l.b16 %v262
      %v341 = vunpack.c.l.b16 %v263
      %v342 = vunpack.c.l.b16 %v265
      %v343 = vunpack.c.l.b16 %v266
      %v344 = vunpack.c.l.b16 %v268
      %v345 = vunpack.c.l.b16 %v269
      %v346 = vunpack.c.l.b16 %v271
      %v347 = vunpack.c.l.b16 %v272
      %v348 = vunpack.c.l.b16 %v274
      %v349 = vunpack.c.l.b16 %v275
      %v350 = vunpack.c.l.b16 %v277
      %v351 = vunpack.c.l.b16 %v278
      %v352 = vunpack.c.l.b16 %v280
      %v353 = vunpack.c.l.b16 %v281
      %v354 = vunpack.c.l.b16 %v283
      %v355 = vunpack.c.l.b16 %v284
      %v356 = vunpack.c.l.b16 %v286
      %v357 = vunpack.c.l.b16 %v287
      %v358 = vunpack.c.l.b16 %v289
      %v359 = vunpack.c.l.b16 %v290
      %v360 = vunpack.c.l.b16 %v292
      %v361 = vunpack.c.l.b16 %v293
      %v362 = vpack.c.b16 %v331, %v330
      %v363 = vpack.c.b16 %v333, %v332
      %v364 = vpack.c.b16 %v335, %v334
      %v365 = vpack.c.b16 %v337, %v336
      %v366 = vpack.c.b16 %v339, %v338
      %v367 = vpack.c.b16 %v341, %v340
      %v368 = vpack.c.b16 %v343, %v342
      %v369 = vpack.c.b16 %v345, %v344
      %v370 = vpack.c.b16 %v347, %v346
      %v371 = vpack.c.b16 %v349, %v348
      %v372 = vpack.c.b16 %v351, %v350
      %v373 = vpack.c.b16 %v353, %v352
      %v374 = vpack.c.b16 %v355, %v354
      %v375 = vpack.c.b16 %v357, %v356
      %v376 = vpack.c.b16 %v359, %v358
      %v377 = vpack.c.b16 %v361, %v360
      %v394 = vunpack.c.l.b16 %v249
      %v395 = vunpack.c.l.b16 %v252
      %v396 = vunpack.c.l.b16 %v255
      %v397 = vunpack.c.l.b16 %v258
      %v398 = vunpack.c.l.b16 %v261
      %v399 = vunpack.c.l.b16 %v264
      %v400 = vunpack.c.l.b16 %v267
      %v401 = vunpack.c.l.b16 %v270
      %v402 = vunpack.c.l.b16 %v273
      %v403 = vunpack.c.l.b16 %v276
      %v404 = vunpack.c.l.b16 %v279
      %v405 = vunpack.c.l.b16 %v282
      %v406 = vunpack.c.l.b16 %v285
      %v407 = vunpack.c.l.b16 %v288
      %v408 = vunpack.c.l.b16 %v291
      %v409 = vunpack.c.l.b16 %v294
      %v410 = vpack.c.b16 %v394, %v394
      %v411 = vpack.c.b16 %v395, %v395
      %v412 = vpack.c.b16 %v396, %v396
      %v413 = vpack.c.b16 %v397, %v397
      %v414 = vpack.c.b16 %v398, %v398
      %v415 = vpack.c.b16 %v399, %v399
      %v416 = vpack.c.b16 %v400, %v400
      %v417 = vpack.c.b16 %v401, %v401
      %v418 = vpack.c.b16 %v402, %v402
      %v419 = vpack.c.b16 %v403, %v403
      %v420 = vpack.c.b16 %v404, %v404
      %v421 = vpack.c.b16 %v405, %v405
      %v422 = vpack.c.b16 %v406, %v406
      %v423 = vpack.c.b16 %v407, %v407
      %v424 = vpack.c.b16 %v408, %v408
      %v425 = vpack.c.b16 %v409, %v409
      %vm426 = vsmask.f32 7424
      %v428 = vshrl.u32 %v362, 16
      %v430 = vshll.u32 %v362, 16
      %v432 = vrot.slane %v430, 1
      %v433 = vor.u32 %v428, %v432
      %v435 = vshll.u32 %v410, 16
      %v437 = vrot.slane %v435, 1
      %v438 = vsel %vm426, %v433, %v437
      %v440 = vshrl.u32 %v363, 16
      %v442 = vshll.u32 %v363, 16
      %v444 = vrot.slane %v442, 1
      %v445 = vor.u32 %v440, %v444
      %v447 = vshll.u32 %v411, 16
      %v449 = vrot.slane %v447, 1
      %v450 = vsel %vm426, %v445, %v449
      %v452 = vshrl.u32 %v364, 16
      %v454 = vshll.u32 %v364, 16
      %v456 = vrot.slane %v454, 1
      %v457 = vor.u32 %v452, %v456
      %v459 = vshll.u32 %v412, 16
      %v461 = vrot.slane %v459, 1
      %v462 = vsel %vm426, %v457, %v461
      %v464 = vshrl.u32 %v365, 16
      %v466 = vshll.u32 %v365, 16
      %v468 = vrot.slane %v466, 1
      %v469 = vor.u32 %v464, %v468
      %v471 = vshll.u32 %v413, 16
      %v473 = vrot.slane %v471, 1
      %v474 = vsel %vm426, %v469, %v473
      %v476 = vshrl.u32 %v366, 16
      %v478 = vshll.u32 %v366, 16
      %v480 = vrot.slane %v478, 1
      %v481 = vor.u32 %v476, %v480
      %v483 = vshll.u32 %v414, 16
      %v485 = vrot.slane %v483, 1
      %v486 = vsel %vm426, %v481, %v485
      %v488 = vshrl.u32 %v367, 16
      %v490 = vshll.u32 %v367, 16
      %v492 = vrot.slane %v490, 1
      %v493 = vor.u32 %v488, %v492
      %v495 = vshll.u32 %v415, 16
      %v497 = vrot.slane %v495, 1
      %v498 = vsel %vm426, %v493, %v497
      %v500 = vshrl.u32 %v368, 16
      %v502 = vshll.u32 %v368, 16
      %v504 = vrot.slane %v502, 1
      %v505 = vor.u32 %v500, %v504
      %v507 = vshll.u32 %v416, 16
      %v509 = vrot.slane %v507, 1
      %v510 = vsel %vm426, %v505, %v509
      %v512 = vshrl.u32 %v369, 16
      %v514 = vshll.u32 %v369, 16
      %v516 = vrot.slane %v514, 1
      %v517 = vor.u32 %v512, %v516
      %v519 = vshll.u32 %v417, 16
      %v521 = vrot.slane %v519, 1
      %v522 = vsel %vm426, %v517, %v521
      %v524 = vshrl.u32 %v370, 16
      %v526 = vshll.u32 %v370, 16
      %v528 = vrot.slane %v526, 1
      %v529 = vor.u32 %v524, %v528
      %v531 = vshll.u32 %v418, 16
      %v533 = vrot.slane %v531, 1
      %v534 = vsel %vm426, %v529, %v533
      %v536 = vshrl.u32 %v371, 16
      %v538 = vshll.u32 %v371, 16
      %v540 = vrot.slane %v538, 1
      %v541 = vor.u32 %v536, %v540
      %v543 = vshll.u32 %v419, 16
      %v545 = vrot.slane %v543, 1
      %v546 = vsel %vm426, %v541, %v545
      %v548 = vshrl.u32 %v372, 16
      %v550 = vshll.u32 %v372, 16
      %v552 = vrot.slane %v550, 1
      %v553 = vor.u32 %v548, %v552
      %v555 = vshll.u32 %v420, 16
      %v557 = vrot.slane %v555, 1
      %v558 = vsel %vm426, %v553, %v557
      %v560 = vshrl.u32 %v373, 16
      %v562 = vshll.u32 %v373, 16
      %v564 = vrot.slane %v562, 1
      %v565 = vor.u32 %v560, %v564
      %v567 = vshll.u32 %v421, 16
      %v569 = vrot.slane %v567, 1
      %v570 = vsel %vm426, %v565, %v569
      %v572 = vshrl.u32 %v374, 16
      %v574 = vshll.u32 %v374, 16
      %v576 = vrot.slane %v574, 1
      %v577 = vor.u32 %v572, %v576
      %v579 = vshll.u32 %v422, 16
      %v581 = vrot.slane %v579, 1
      %v582 = vsel %vm426, %v577, %v581
      %v584 = vshrl.u32 %v375, 16
      %v586 = vshll.u32 %v375, 16
      %v588 = vrot.slane %v586, 1
      %v589 = vor.u32 %v584, %v588
      %v591 = vshll.u32 %v423, 16
      %v593 = vrot.slane %v591, 1
      %v594 = vsel %vm426, %v589, %v593
      %v596 = vshrl.u32 %v376, 16
      %v598 = vshll.u32 %v376, 16
      %v600 = vrot.slane %v598, 1
      %v601 = vor.u32 %v596, %v600
      %v603 = vshll.u32 %v424, 16
      %v605 = vrot.slane %v603, 1
      %v606 = vsel %vm426, %v601, %v605
      %v608 = vshrl.u32 %v377, 16
      %v610 = vshll.u32 %v377, 16
      %v612 = vrot.slane %v610, 1
      %v613 = vor.u32 %v608, %v612
      %v615 = vshll.u32 %v425, 16
      %v617 = vrot.slane %v615, 1
      %v618 = vsel %vm426, %v613, %v617
      %619 = vrot.lane.b32.xlu0 %v438, 4
      %v620 = vpop.permute.xlu0 %619
      %621 = vrot.lane.b32.xlu0 %v450, 4
      %v622 = vpop.permute.xlu0 %621
      %623 = vrot.lane.b32.xlu0 %v462, 4
      %v624 = vpop.permute.xlu0 %623
      %625 = vrot.lane.b32.xlu0 %v474, 4
      %v626 = vpop.permute.xlu0 %625
      %627 = vrot.lane.b32.xlu0 %v486, 4
      %v628 = vpop.permute.xlu0 %627
      %629 = vrot.lane.b32.xlu0 %v498, 4
      %v630 = vpop.permute.xlu0 %629
      %631 = vrot.lane.b32.xlu0 %v510, 4
      %v632 = vpop.permute.xlu0 %631
      %633 = vrot.lane.b32.xlu0 %v522, 4
      %v634 = vpop.permute.xlu0 %633
      %635 = vrot.lane.b32.xlu0 %v534, 4
      %v636 = vpop.permute.xlu0 %635
      %637 = vrot.lane.b32.xlu0 %v546, 4
      %v638 = vpop.permute.xlu0 %637
      %639 = vrot.lane.b32.xlu0 %v558, 4
      %v640 = vpop.permute.xlu0 %639
      %641 = vrot.lane.b32.xlu0 %v570, 4
      %v642 = vpop.permute.xlu0 %641
      %643 = vrot.lane.b32.xlu0 %v582, 4
      %v644 = vpop.permute.xlu0 %643
      %645 = vrot.lane.b32.xlu0 %v594, 4
      %v646 = vpop.permute.xlu0 %645
      %647 = vrot.lane.b32.xlu0 %v606, 4
      %v648 = vpop.permute.xlu0 %647
      %649 = vrot.lane.b32.xlu0 %v618, 4
      %v650 = vpop.permute.xlu0 %649
      %v653 = vunpack.c.l.b16 %v295
      %v654 = vunpack.c.l.b16 %v296
      %v655 = vpack.c.b16 %v654, %v653
      %656 = vrot.lane.b32.xlu0 %v363, 8
      %v657 = vpop.permute.xlu0 %656
      %658 = vrot.lane.b32.xlu0 %v364, 8
      %v659 = vpop.permute.xlu0 %658
      %660 = vrot.lane.b32.xlu0 %v365, 8
      %v661 = vpop.permute.xlu0 %660
      %662 = vrot.lane.b32.xlu0 %v366, 8
      %v663 = vpop.permute.xlu0 %662
      %664 = vrot.lane.b32.xlu0 %v367, 8
      %v665 = vpop.permute.xlu0 %664
      %666 = vrot.lane.b32.xlu0 %v368, 8
      %v667 = vpop.permute.xlu0 %666
      %668 = vrot.lane.b32.xlu0 %v369, 8
      %v669 = vpop.permute.xlu0 %668
      %670 = vrot.lane.b32.xlu0 %v370, 8
      %v671 = vpop.permute.xlu0 %670
      %672 = vrot.lane.b32.xlu0 %v371, 8
      %v673 = vpop.permute.xlu0 %672
      %674 = vrot.lane.b32.xlu0 %v372, 8
      %v675 = vpop.permute.xlu0 %674
      %676 = vrot.lane.b32.xlu0 %v373, 8
      %v677 = vpop.permute.xlu0 %676
      %678 = vrot.lane.b32.xlu0 %v374, 8
      %v679 = vpop.permute.xlu0 %678
      %680 = vrot.lane.b32.xlu0 %v375, 8
      %v681 = vpop.permute.xlu0 %680
      %682 = vrot.lane.b32.xlu0 %v376, 8
      %v683 = vpop.permute.xlu0 %682
      %684 = vrot.lane.b32.xlu0 %v377, 8
      %v685 = vpop.permute.xlu0 %684
      %686 = vrot.lane.b32.xlu0 %v655, 8
      %v687 = vpop.permute.xlu0 %686
      %v689 = vunpack.c.l.b16 %v297
      %v690 = vpack.c.b16 %v689, %v689
      %v692 = vshrl.u32 %v655, 16
      %v694 = vshll.u32 %v655, 16
      %v696 = vrot.slane %v694, 1
      %v697 = vor.u32 %v692, %v696
      %v699 = vshll.u32 %v690, 16
      %v701 = vrot.slane %v699, 1
      %v702 = vsel %vm426, %v697, %v701
      %703 = vrot.lane.b32.xlu0 %v450, 12
      %v704 = vpop.permute.xlu0 %703
      %705 = vrot.lane.b32.xlu0 %v462, 12
      %v706 = vpop.permute.xlu0 %705
      %707 = vrot.lane.b32.xlu0 %v474, 12
      %v708 = vpop.permute.xlu0 %707
      %709 = vrot.lane.b32.xlu0 %v486, 12
      %v710 = vpop.permute.xlu0 %709
      %711 = vrot.lane.b32.xlu0 %v498, 12
      %v712 = vpop.permute.xlu0 %711
      %713 = vrot.lane.b32.xlu0 %v510, 12
      %v714 = vpop.permute.xlu0 %713
      %715 = vrot.lane.b32.xlu0 %v522, 12
      %v716 = vpop.permute.xlu0 %715
      %717 = vrot.lane.b32.xlu0 %v534, 12
      %v718 = vpop.permute.xlu0 %717
      %719 = vrot.lane.b32.xlu0 %v546, 12
      %v720 = vpop.permute.xlu0 %719
      %721 = vrot.lane.b32.xlu0 %v558, 12
      %v722 = vpop.permute.xlu0 %721
      %723 = vrot.lane.b32.xlu0 %v570, 12
      %v724 = vpop.permute.xlu0 %723
      %725 = vrot.lane.b32.xlu0 %v582, 12
      %v726 = vpop.permute.xlu0 %725
      %727 = vrot.lane.b32.xlu0 %v594, 12
      %v728 = vpop.permute.xlu0 %727
      %729 = vrot.lane.b32.xlu0 %v606, 12
      %v730 = vpop.permute.xlu0 %729
      %731 = vrot.lane.b32.xlu0 %v618, 12
      %v732 = vpop.permute.xlu0 %731
      %733 = vrot.lane.b32.xlu0 %v702, 12
      %v734 = vpop.permute.xlu0 %733
      %vm735 = vcmask 31744
      %v737 = vsel %vm735, %v362, %v620
      %v739 = vsel %vm735, %v363, %v622
      %v741 = vsel %vm735, %v364, %v624
      %v743 = vsel %vm735, %v365, %v626
      %v745 = vsel %vm735, %v366, %v628
      %v747 = vsel %vm735, %v367, %v630
      %v749 = vsel %vm735, %v368, %v632
      %v751 = vsel %vm735, %v369, %v634
      %v753 = vsel %vm735, %v370, %v636
      %v755 = vsel %vm735, %v371, %v638
      %v757 = vsel %vm735, %v372, %v640
      %v759 = vsel %vm735, %v373, %v642
      %v761 = vsel %vm735, %v374, %v644
      %v763 = vsel %vm735, %v375, %v646
      %v765 = vsel %vm735, %v376, %v648
      %v767 = vsel %vm735, %v377, %v650
      %vm768 = vcmask 64512
      %v770 = vsel %vm768, %v737, %v657
      %v772 = vsel %vm768, %v739, %v659
      %v774 = vsel %vm768, %v741, %v661
      %v776 = vsel %vm768, %v743, %v663
      %v778 = vsel %vm768, %v745, %v665
      %v780 = vsel %vm768, %v747, %v667
      %v782 = vsel %vm768, %v749, %v669
      %v784 = vsel %vm768, %v751, %v671
      %v786 = vsel %vm768, %v753, %v673
      %v788 = vsel %vm768, %v755, %v675
      %v790 = vsel %vm768, %v757, %v677
      %v792 = vsel %vm768, %v759, %v679
      %v794 = vsel %vm768, %v761, %v681
      %v796 = vsel %vm768, %v763, %v683
      %v798 = vsel %vm768, %v765, %v685
      %v800 = vsel %vm768, %v767, %v687
      %vm801 = vcmask 97280
      %v803 = vsel %vm801, %v770, %v704
      %v805 = vsel %vm801, %v772, %v706
      %v807 = vsel %vm801, %v774, %v708
      %v809 = vsel %vm801, %v776, %v710
      %v811 = vsel %vm801, %v778, %v712
      %v813 = vsel %vm801, %v780, %v714
      %v815 = vsel %vm801, %v782, %v716
      %v817 = vsel %vm801, %v784, %v718
      %v819 = vsel %vm801, %v786, %v720
      %v821 = vsel %vm801, %v788, %v722
      %v823 = vsel %vm801, %v790, %v724
      %v825 = vsel %vm801, %v792, %v726
      %v827 = vsel %vm801, %v794, %v728
      %v829 = vsel %vm801, %v796, %v730
      %v831 = vsel %vm801, %v798, %v732
      %v833 = vsel %vm801, %v800, %v734
      %v834 = vld [vmem:[%s1] sm:$0xf]
      %v835 = vld [vmem:[%s1 + $0x4] sm:$0xf]
      %v838 = vunpack.c.l.b16 %v834
      %v839 = vunpack.c.l.b16 %v835
      %v840 = vpack.c.b16 %v839, %v838
      %vm842 = vcmask 130048
      %v843 = vsel %vm842, %v803, 0
      %v845 = vsel %vm842, %v805, 0
      %v847 = vsel %vm842, %v807, 0
      %v849 = vsel %vm842, %v809, 0
      %v851 = vsel %vm842, %v811, 0
      %v853 = vsel %vm842, %v813, 0
      %v855 = vsel %vm842, %v815, 0
      %v857 = vsel %vm842, %v817, 0
      %v859 = vsel %vm842, %v819, 0
      %v861 = vsel %vm842, %v821, 0
      %v863 = vsel %vm842, %v823, 0
      %v865 = vsel %vm842, %v825, 0
      %v867 = vsel %vm842, %v827, 0
      %v869 = vsel %vm842, %v829, 0
      %v871 = vsel %vm842, %v831, 0
      %v873 = vsel %vm842, %v833, 0
      %875 = vmatprep.subr.bf16.mxu0 0
      %876 = vmatpush1.bf16.msra.mxu0 %v840
      %877 = vmatprep.subr.bf16.mxu0 0
      %878 = vmatpush1.bf16.msra.mxu0 0
      %879 = vmatprep.subr.bf16.mxu0 0
      %880 = vmatpush1.bf16.msra.mxu0 0
      %881 = vmatprep.subr.bf16.mxu0 0
      %882 = vmatpush1.bf16.msra.mxu0 0
      %883 = vmatprep.subr.bf16.mxu0 0
      %884 = vmatpush1.bf16.msra.mxu0 0
      %885 = vmatprep.subr.bf16.mxu0 0
      %886 = vmatpush1.bf16.msra.mxu0 0
      %887 = vmatprep.subr.bf16.mxu0 0
      %888 = vmatpush1.bf16.msra.mxu0 0
      %889 = vmatprep.subr.bf16.mxu0 0
      %890 = vmatpush1.bf16.msra.mxu0 0
      %891 = vmatprep.subr.bf16.mxu0 0
      %892 = vmatpush1.bf16.msra.mxu0 0
      %893 = vmatprep.subr.bf16.mxu0 0
      %894 = vmatpush1.bf16.msra.mxu0 0
      %895 = vmatprep.subr.bf16.mxu0 0
      %896 = vmatpush1.bf16.msra.mxu0 0
      %897 = vmatprep.subr.bf16.mxu0 0
      %898 = vmatpush1.bf16.msra.mxu0 0
      %899 = vmatprep.subr.bf16.mxu0 0
      %900 = vmatpush1.bf16.msra.mxu0 0
      %901 = vmatprep.subr.bf16.mxu0 0
      %902 = vmatpush1.bf16.msra.mxu0 0
      %903 = vmatprep.subr.bf16.mxu0 0
      %904 = vmatpush1.bf16.msra.mxu0 0
      %905 = vmatprep.subr.bf16.mxu0 0
      %906 = vmatpush1.bf16.msra.mxu0 0
      %907 = vmatprep.mubr.bf16.mxu0 0
      %908 = vmatmul.mubr.bf16.gmra.mrb[0].mxu0 %v843
      %v909 = vpop.f32.mrb[0].mxu0
      %v910 = vadd.f32 0.0, %v909
      %v911 = vpop.f32.mrb[0].mxu0
      %v912 = vpop.f32.mrb[0].mxu0
      %v913 = vadd.f32 0.0, %v912
      %v914 = vpop.f32.mrb[0].mxu0
      %915 = vmatprep.mubr.bf16.mxu0 0
      %916 = vmatmul.mubr.bf16.gmra.mrb[0].mxu0 %v845
      %v917 = vpop.f32.mrb[0].mxu0
      %v918 = vadd.f32 0.0, %v917
      %v919 = vpop.f32.mrb[0].mxu0
      %v920 = vpop.f32.mrb[0].mxu0
      %v921 = vadd.f32 0.0, %v920
      %v922 = vpop.f32.mrb[0].mxu0
      %923 = vmatprep.mubr.bf16.mxu0 0
      %924 = vmatmul.mubr.bf16.gmra.mrb[0].mxu0 %v847
      %v925 = vpop.f32.mrb[0].mxu0
      %v926 = vadd.f32 0.0, %v925
      %v927 = vpop.f32.mrb[0].mxu0
      %v928 = vpop.f32.mrb[0].mxu0
      %v929 = vadd.f32 0.0, %v928
      %v930 = vpop.f32.mrb[0].mxu0
      %931 = vmatprep.mubr.bf16.mxu0 0
      %932 = vmatmul.mubr.bf16.gmra.mrb[0].mxu0 %v849
      %v933 = vpop.f32.mrb[0].mxu0
      %v934 = vadd.f32 0.0, %v933
      %v935 = vpop.f32.mrb[0].mxu0
      %v936 = vpop.f32.mrb[0].mxu0
      %v937 = vadd.f32 0.0, %v936
      %v938 = vpop.f32.mrb[0].mxu0
      %939 = vmatprep.mubr.bf16.mxu0 0
      %940 = vmatmul.mubr.bf16.gmra.mrb[0].mxu0 %v851
      %v941 = vpop.f32.mrb[0].mxu0
      %v942 = vadd.f32 0.0, %v941
      %v943 = vpop.f32.mrb[0].mxu0
      %v944 = vpop.f32.mrb[0].mxu0
      %v945 = vadd.f32 0.0, %v944
      %v946 = vpop.f32.mrb[0].mxu0
      %947 = vmatprep.mubr.bf16.mxu0 0
      %948 = vmatmul.mubr.bf16.gmra.mrb[0].mxu0 %v853
      %v949 = vpop.f32.mrb[0].mxu0
      %v950 = vadd.f32 0.0, %v949
      %v951 = vpop.f32.mrb[0].mxu0
      %v952 = vpop.f32.mrb[0].mxu0
      %v953 = vadd.f32 0.0, %v952
      %v954 = vpop.f32.mrb[0].mxu0
      %955 = vmatprep.mubr.bf16.mxu0 0
      %956 = vmatmul.mubr.bf16.gmra.mrb[0].mxu0 %v855
      %v957 = vpop.f32.mrb[0].mxu0
      %v958 = vadd.f32 0.0, %v957
      %v959 = vpop.f32.mrb[0].mxu0
      %v960 = vpop.f32.mrb[0].mxu0
      %v961 = vadd.f32 0.0, %v960
      %v962 = vpop.f32.mrb[0].mxu0
      %963 = vmatprep.mubr.bf16.mxu0 0
      %964 = vmatmul.mubr.bf16.gmra.mrb[0].mxu0 %v857
      %v965 = vpop.f32.mrb[0].mxu0
      %v966 = vadd.f32 0.0, %v965
      %v967 = vpop.f32.mrb[0].mxu0
      %v968 = vpop.f32.mrb[0].mxu0
      %v969 = vadd.f32 0.0, %v968
      %v970 = vpop.f32.mrb[0].mxu0
      %971 = vmatprep.mubr.bf16.mxu0 0
      %972 = vmatmul.mubr.bf16.gmra.mrb[0].mxu0 %v859
      %v973 = vpop.f32.mrb[0].mxu0
      %v974 = vadd.f32 0.0, %v973
      %v975 = vpop.f32.mrb[0].mxu0
      %v976 = vpop.f32.mrb[0].mxu0
      %v977 = vadd.f32 0.0, %v976
      %v978 = vpop.f32.mrb[0].mxu0
      %979 = vmatprep.mubr.bf16.mxu0 0
      %980 = vmatmul.mubr.bf16.gmra.mrb[0].mxu0 %v861
      %v981 = vpop.f32.mrb[0].mxu0
      %v982 = vadd.f32 0.0, %v981
      %v983 = vpop.f32.mrb[0].mxu0
      %v984 = vpop.f32.mrb[0].mxu0
      %v985 = vadd.f32 0.0, %v984
      %v986 = vpop.f32.mrb[0].mxu0
      %987 = vmatprep.mubr.bf16.mxu0 0
      %988 = vmatmul.mubr.bf16.gmra.mrb[0].mxu0 %v863
      %v989 = vpop.f32.mrb[0].mxu0
      %v990 = vadd.f32 0.0, %v989
      %v991 = vpop.f32.mrb[0].mxu0
      %v992 = vpop.f32.mrb[0].mxu0
      %v993 = vadd.f32 0.0, %v992
      %v994 = vpop.f32.mrb[0].mxu0
      %995 = vmatprep.mubr.bf16.mxu0 0
      %996 = vmatmul.mubr.bf16.gmra.mrb[0].mxu0 %v865
      %v997 = vpop.f32.mrb[0].mxu0
      %v998 = vadd.f32 0.0, %v997
      %v999 = vpop.f32.mrb[0].mxu0
      %v1000 = vpop.f32.mrb[0].mxu0
      %v1001 = vadd.f32 0.0, %v1000
      %v1002 = vpop.f32.mrb[0].mxu0
      %1003 = vmatprep.mubr.bf16.mxu0 0
      %1004 = vmatmul.mubr.bf16.gmra.mrb[0].mxu0 %v867
      %v1005 = vpop.f32.mrb[0].mxu0
      %v1006 = vadd.f32 0.0, %v1005
      %v1007 = vpop.f32.mrb[0].mxu0
      %v1008 = vpop.f32.mrb[0].mxu0
      %v1009 = vadd.f32 0.0, %v1008
      %v1010 = vpop.f32.mrb[0].mxu0
      %1011 = vmatprep.mubr.bf16.mxu0 0
      %1012 = vmatmul.mubr.bf16.gmra.mrb[0].mxu0 %v869
      %v1013 = vpop.f32.mrb[0].mxu0
      %v1014 = vadd.f32 0.0, %v1013
      %v1015 = vpop.f32.mrb[0].mxu0
      %v1016 = vpop.f32.mrb[0].mxu0
      %v1017 = vadd.f32 0.0, %v1016
      %v1018 = vpop.f32.mrb[0].mxu0
      %1019 = vmatprep.mubr.bf16.mxu0 0
      %1020 = vmatmul.mubr.bf16.gmra.mrb[0].mxu0 %v871
      %v1021 = vpop.f32.mrb[0].mxu0
      %v1022 = vadd.f32 0.0, %v1021
      %v1023 = vpop.f32.mrb[0].mxu0
      %v1024 = vpop.f32.mrb[0].mxu0
      %v1025 = vadd.f32 0.0, %v1024
      %v1026 = vpop.f32.mrb[0].mxu0
      %1027 = vmatprep.mubr.bf16.mxu0 0
      %1028 = vmatmul.mubr.bf16.gmra.mrb[0].mxu0 %v873
      %v1029 = vpop.f32.mrb[0].mxu0
      %v1030 = vadd.f32 0.0, %v1029
      %v1031 = vpop.f32.mrb[0].mxu0
      %v1032 = vpop.f32.mrb[0].mxu0
      %v1033 = vadd.f32 0.0, %v1032
      %v1034 = vpop.f32.mrb[0].mxu0
      %1035 = vdwg.mxu0
      %v1036 = vld [vmem:[%s2] sm:$0xf]
      %v1037 = vld [vmem:[%s2 + $0x4] sm:$0xf]
      %v1040 = vunpack.c.l.b16 %v1036
      %v1041 = vunpack.c.l.b16 %v1037
      %v1042 = vpack.c.b16 %v1041, %v1040
      %1044 = vmatprep.subr.bf16.mxu0 0
      %1045 = vmatpush1.bf16.msra.mxu0 %v1042
      %1046 = vmatprep.subr.bf16.mxu0 0
      %1047 = vmatpush1.bf16.msra.mxu0 0
      %1048 = vmatprep.subr.bf16.mxu0 0
      %1049 = vmatpush1.bf16.msra.mxu0 0
      %1050 = vmatprep.subr.bf16.mxu0 0
      %1051 = vmatpush1.bf16.msra.mxu0 0
      %1052 = vmatprep.subr.bf16.mxu0 0
      %1053 = vmatpush1.bf16.msra.mxu0 0
      %1054 = vmatprep.subr.bf16.mxu0 0
      %1055 = vmatpush1.bf16.msra.mxu0 0
      %1056 = vmatprep.subr.bf16.mxu0 0
      %1057 = vmatpush1.bf16.msra.mxu0 0
      %1058 = vmatprep.subr.bf16.mxu0 0
      %1059 = vmatpush1.bf16.msra.mxu0 0
      %1060 = vmatprep.subr.bf16.mxu0 0
      %1061 = vmatpush1.bf16.msra.mxu0 0
      %1062 = vmatprep.subr.bf16.mxu0 0
      %1063 = vmatpush1.bf16.msra.mxu0 0
      %1064 = vmatprep.subr.bf16.mxu0 0
      %1065 = vmatpush1.bf16.msra.mxu0 0
      %1066 = vmatprep.subr.bf16.mxu0 0
      %1067 = vmatpush1.bf16.msra.mxu0 0
      %1068 = vmatprep.subr.bf16.mxu0 0
      %1069 = vmatpush1.bf16.msra.mxu0 0
      %1070 = vmatprep.subr.bf16.mxu0 0
      %1071 = vmatpush1.bf16.msra.mxu0 0
      %1072 = vmatprep.subr.bf16.mxu0 0
      %1073 = vmatpush1.bf16.msra.mxu0 0
      %1074 = vmatprep.subr.bf16.mxu0 0
      %1075 = vmatpush1.bf16.msra.mxu0 0
      %1076 = vmatprep.mubr.bf16.mxu0 0
      %1077 = vmatmul.mubr.bf16.gmra.mrb[0].mxu0 %v843
      %v1078 = vpop.f32.mrb[0].mxu0
      %v1079 = vadd.f32 0.0, %v1078
      %v1080 = vpop.f32.mrb[0].mxu0
      %v1081 = vpop.f32.mrb[0].mxu0
      %v1082 = vadd.f32 0.0, %v1081
      %v1083 = vpop.f32.mrb[0].mxu0
      %1084 = vmatprep.mubr.bf16.mxu0 0
      %1085 = vmatmul.mubr.bf16.gmra.mrb[0].mxu0 %v845
      %v1086 = vpop.f32.mrb[0].mxu0
      %v1087 = vadd.f32 0.0, %v1086
      %v1088 = vpop.f32.mrb[0].mxu0
      %v1089 = vpop.f32.mrb[0].mxu0
      %v1090 = vadd.f32 0.0, %v1089
      %v1091 = vpop.f32.mrb[0].mxu0
      %1092 = vmatprep.mubr.bf16.mxu0 0
      %1093 = vmatmul.mubr.bf16.gmra.mrb[0].mxu0 %v847
      %v1094 = vpop.f32.mrb[0].mxu0
      %v1095 = vadd.f32 0.0, %v1094
      %v1096 = vpop.f32.mrb[0].mxu0
      %v1097 = vpop.f32.mrb[0].mxu0
      %v1098 = vadd.f32 0.0, %v1097
      %v1099 = vpop.f32.mrb[0].mxu0
      %1100 = vmatprep.mubr.bf16.mxu0 0
      %1101 = vmatmul.mubr.bf16.gmra.mrb[0].mxu0 %v849
      %v1102 = vpop.f32.mrb[0].mxu0
      %v1103 = vadd.f32 0.0, %v1102
      %v1104 = vpop.f32.mrb[0].mxu0
      %v1105 = vpop.f32.mrb[0].mxu0
      %v1106 = vadd.f32 0.0, %v1105
      %v1107 = vpop.f32.mrb[0].mxu0
      %1108 = vmatprep.mubr.bf16.mxu0 0
      %1109 = vmatmul.mubr.bf16.gmra.mrb[0].mxu0 %v851
      %v1110 = vpop.f32.mrb[0].mxu0
      %v1111 = vadd.f32 0.0, %v1110
      %v1112 = vpop.f32.mrb[0].mxu0
      %v1113 = vpop.f32.mrb[0].mxu0
      %v1114 = vadd.f32 0.0, %v1113
      %v1115 = vpop.f32.mrb[0].mxu0
      %1116 = vmatprep.mubr.bf16.mxu0 0
      %1117 = vmatmul.mubr.bf16.gmra.mrb[0].mxu0 %v853
      %v1118 = vpop.f32.mrb[0].mxu0
      %v1119 = vadd.f32 0.0, %v1118
      %v1120 = vpop.f32.mrb[0].mxu0
      %v1121 = vpop.f32.mrb[0].mxu0
      %v1122 = vadd.f32 0.0, %v1121
      %v1123 = vpop.f32.mrb[0].mxu0
      %1124 = vmatprep.mubr.bf16.mxu0 0
      %1125 = vmatmul.mubr.bf16.gmra.mrb[0].mxu0 %v855
      %v1126 = vpop.f32.mrb[0].mxu0
      %v1127 = vadd.f32 0.0, %v1126
      %v1128 = vpop.f32.mrb[0].mxu0
      %v1129 = vpop.f32.mrb[0].mxu0
      %v1130 = vadd.f32 0.0, %v1129
      %v1131 = vpop.f32.mrb[0].mxu0
      %1132 = vmatprep.mubr.bf16.mxu0 0
      %1133 = vmatmul.mubr.bf16.gmra.mrb[0].mxu0 %v857
      %v1134 = vpop.f32.mrb[0].mxu0
      %v1135 = vadd.f32 0.0, %v1134
      %v1136 = vpop.f32.mrb[0].mxu0
      %v1137 = vpop.f32.mrb[0].mxu0
      %v1138 = vadd.f32 0.0, %v1137
      %v1139 = vpop.f32.mrb[0].mxu0
      %1140 = vmatprep.mubr.bf16.mxu0 0
      %1141 = vmatmul.mubr.bf16.gmra.mrb[0].mxu0 %v859
      %v1142 = vpop.f32.mrb[0].mxu0
      %v1143 = vadd.f32 0.0, %v1142
      %v1144 = vpop.f32.mrb[0].mxu0
      %v1145 = vpop.f32.mrb[0].mxu0
      %v1146 = vadd.f32 0.0, %v1145
      %v1147 = vpop.f32.mrb[0].mxu0
      %1148 = vmatprep.mubr.bf16.mxu0 0
      %1149 = vmatmul.mubr.bf16.gmra.mrb[0].mxu0 %v861
      %v1150 = vpop.f32.mrb[0].mxu0
      %v1151 = vadd.f32 0.0, %v1150
      %v1152 = vpop.f32.mrb[0].mxu0
      %v1153 = vpop.f32.mrb[0].mxu0
      %v1154 = vadd.f32 0.0, %v1153
      %v1155 = vpop.f32.mrb[0].mxu0
      %1156 = vmatprep.mubr.bf16.mxu0 0
      %1157 = vmatmul.mubr.bf16.gmra.mrb[0].mxu0 %v863
      %v1158 = vpop.f32.mrb[0].mxu0
      %v1159 = vadd.f32 0.0, %v1158
      %v1160 = vpop.f32.mrb[0].mxu0
      %v1161 = vpop.f32.mrb[0].mxu0
      %v1162 = vadd.f32 0.0, %v1161
      %v1163 = vpop.f32.mrb[0].mxu0
      %1164 = vmatprep.mubr.bf16.mxu0 0
      %1165 = vmatmul.mubr.bf16.gmra.mrb[0].mxu0 %v865
      %v1166 = vpop.f32.mrb[0].mxu0
      %v1167 = vadd.f32 0.0, %v1166
      %v1168 = vpop.f32.mrb[0].mxu0
      %v1169 = vpop.f32.mrb[0].mxu0
      %v1170 = vadd.f32 0.0, %v1169
      %v1171 = vpop.f32.mrb[0].mxu0
      %1172 = vmatprep.mubr.bf16.mxu0 0
      %1173 = vmatmul.mubr.bf16.gmra.mrb[0].mxu0 %v867
      %v1174 = vpop.f32.mrb[0].mxu0
      %v1175 = vadd.f32 0.0, %v1174
      %v1176 = vpop.f32.mrb[0].mxu0
      %v1177 = vpop.f32.mrb[0].mxu0
      %v1178 = vadd.f32 0.0, %v1177
      %v1179 = vpop.f32.mrb[0].mxu0
      %1180 = vmatprep.mubr.bf16.mxu0 0
      %1181 = vmatmul.mubr.bf16.gmra.mrb[0].mxu0 %v869
      %v1182 = vpop.f32.mrb[0].mxu0
      %v1183 = vadd.f32 0.0, %v1182
      %v1184 = vpop.f32.mrb[0].mxu0
      %v1185 = vpop.f32.mrb[0].mxu0
      %v1186 = vadd.f32 0.0, %v1185
      %v1187 = vpop.f32.mrb[0].mxu0
      %1188 = vmatprep.mubr.bf16.mxu0 0
      %1189 = vmatmul.mubr.bf16.gmra.mrb[0].mxu0 %v871
      %v1190 = vpop.f32.mrb[0].mxu0
      %v1191 = vadd.f32 0.0, %v1190
      %v1192 = vpop.f32.mrb[0].mxu0
      %v1193 = vpop.f32.mrb[0].mxu0
      %v1194 = vadd.f32 0.0, %v1193
      %v1195 = vpop.f32.mrb[0].mxu0
      %1196 = vmatprep.mubr.bf16.mxu0 0
      %1197 = vmatmul.mubr.bf16.gmra.mrb[0].mxu0 %v873
      %v1198 = vpop.f32.mrb[0].mxu0
      %v1199 = vadd.f32 0.0, %v1198
      %v1200 = vpop.f32.mrb[0].mxu0
      %v1201 = vpop.f32.mrb[0].mxu0
      %v1202 = vadd.f32 0.0, %v1201
      %v1203 = vpop.f32.mrb[0].mxu0
      %1204 = vdwg.mxu0
      %1205 = vst.msk [vmem:[%s233] sm:$0xff] %vm842, %v910
      %1206 = vst.msk [vmem:[%s233 + $0x8] sm:$0xff] %vm842, %v913
      %1207 = vst.msk [vmem:[%s233 + $0x20] sm:$0xff] %vm842, %v918
      %1208 = vst.msk [vmem:[%s233 + $0x28] sm:$0xff] %vm842, %v921
      %1209 = vst.msk [vmem:[%s233 + $0x40] sm:$0xff] %vm842, %v926
      %1210 = vst.msk [vmem:[%s233 + $0x48] sm:$0xff] %vm842, %v929
      %1211 = vst.msk [vmem:[%s233 + $0x60] sm:$0xff] %vm842, %v934
      %1212 = vst.msk [vmem:[%s233 + $0x68] sm:$0xff] %vm842, %v937
      %1213 = vst.msk [vmem:[%s233 + $0x80] sm:$0xff] %vm842, %v942
      %1214 = vst.msk [vmem:[%s233 + $0x88] sm:$0xff] %vm842, %v945
      %1215 = vst.msk [vmem:[%s233 + $0xa0] sm:$0xff] %vm842, %v950
      %1216 = vst.msk [vmem:[%s233 + $0xa8] sm:$0xff] %vm842, %v953
      %1217 = vst.msk [vmem:[%s233 + $0xc0] sm:$0xff] %vm842, %v958
      %1218 = vst.msk [vmem:[%s233 + $0xc8] sm:$0xff] %vm842, %v961
      %1219 = vst.msk [vmem:[%s233 + $0xe0] sm:$0xff] %vm842, %v966
      %1220 = vst.msk [vmem:[%s233 + $0xe8] sm:$0xff] %vm842, %v969
      %1221 = vst.msk [vmem:[%s233 + $0x100] sm:$0xff] %vm842, %v974
      %1222 = vst.msk [vmem:[%s233 + $0x108] sm:$0xff] %vm842, %v977
      %1223 = vst.msk [vmem:[%s233 + $0x120] sm:$0xff] %vm842, %v982
      %1224 = vst.msk [vmem:[%s233 + $0x128] sm:$0xff] %vm842, %v985
      %1225 = vst.msk [vmem:[%s233 + $0x140] sm:$0xff] %vm842, %v990
      %1226 = vst.msk [vmem:[%s233 + $0x148] sm:$0xff] %vm842, %v993
      %1227 = vst.msk [vmem:[%s233 + $0x160] sm:$0xff] %vm842, %v998
      %1228 = vst.msk [vmem:[%s233 + $0x168] sm:$0xff] %vm842, %v1001
      %1229 = vst.msk [vmem:[%s233 + $0x180] sm:$0xff] %vm842, %v1006
      %1230 = vst.msk [vmem:[%s233 + $0x188] sm:$0xff] %vm842, %v1009
      %1231 = vst.msk [vmem:[%s233 + $0x1a0] sm:$0xff] %vm842, %v1014
      %1232 = vst.msk [vmem:[%s233 + $0x1a8] sm:$0xff] %vm842, %v1017
      %1233 = vst.msk [vmem:[%s233 + $0x1c0] sm:$0xff] %vm842, %v1022
      %1234 = vst.msk [vmem:[%s233 + $0x1c8] sm:$0xff] %vm842, %v1025
      %1235 = vst.msk [vmem:[%s233 + $0x1e0] sm:$0xff] %vm842, %v1030
      %1236 = vst.msk [vmem:[%s233 + $0x1e8] sm:$0xff] %vm842, %v1033
      %s1237 = scalar_lea.vmem %s233, 16
      %1238 = vst.msk [vmem:[%s1237] sm:$0xff] %vm842, %v1079
      %1239 = vst.msk [vmem:[%s1237 + $0x8] sm:$0xff] %vm842, %v1082
      %1240 = vst.msk [vmem:[%s1237 + $0x20] sm:$0xff] %vm842, %v1087
      %1241 = vst.msk [vmem:[%s1237 + $0x28] sm:$0xff] %vm842, %v1090
      %1242 = vst.msk [vmem:[%s1237 + $0x40] sm:$0xff] %vm842, %v1095
      %1243 = vst.msk [vmem:[%s1237 + $0x48] sm:$0xff] %vm842, %v1098
      %1244 = vst.msk [vmem:[%s1237 + $0x60] sm:$0xff] %vm842, %v1103
      %1245 = vst.msk [vmem:[%s1237 + $0x68] sm:$0xff] %vm842, %v1106
      %1246 = vst.msk [vmem:[%s1237 + $0x80] sm:$0xff] %vm842, %v1111
      %1247 = vst.msk [vmem:[%s1237 + $0x88] sm:$0xff] %vm842, %v1114
      %1248 = vst.msk [vmem:[%s1237 + $0xa0] sm:$0xff] %vm842, %v1119
      %1249 = vst.msk [vmem:[%s1237 + $0xa8] sm:$0xff] %vm842, %v1122
      %1250 = vst.msk [vmem:[%s1237 + $0xc0] sm:$0xff] %vm842, %v1127
      %1251 = vst.msk [vmem:[%s1237 + $0xc8] sm:$0xff] %vm842, %v1130
      %1252 = vst.msk [vmem:[%s1237 + $0xe0] sm:$0xff] %vm842, %v1135
      %1253 = vst.msk [vmem:[%s1237 + $0xe8] sm:$0xff] %vm842, %v1138
      %1254 = vst.msk [vmem:[%s1237 + $0x100] sm:$0xff] %vm842, %v1143
      %1255 = vst.msk [vmem:[%s1237 + $0x108] sm:$0xff] %vm842, %v1146
      %1256 = vst.msk [vmem:[%s1237 + $0x120] sm:$0xff] %vm842, %v1151
      %1257 = vst.msk [vmem:[%s1237 + $0x128] sm:$0xff] %vm842, %v1154
      %1258 = vst.msk [vmem:[%s1237 + $0x140] sm:$0xff] %vm842, %v1159
      %1259 = vst.msk [vmem:[%s1237 + $0x148] sm:$0xff] %vm842, %v1162
      %1260 = vst.msk [vmem:[%s1237 + $0x160] sm:$0xff] %vm842, %v1167
      %1261 = vst.msk [vmem:[%s1237 + $0x168] sm:$0xff] %vm842, %v1170
      %1262 = vst.msk [vmem:[%s1237 + $0x180] sm:$0xff] %vm842, %v1175
      %1263 = vst.msk [vmem:[%s1237 + $0x188] sm:$0xff] %vm842, %v1178
      %1264 = vst.msk [vmem:[%s1237 + $0x1a0] sm:$0xff] %vm842, %v1183
      %1265 = vst.msk [vmem:[%s1237 + $0x1a8] sm:$0xff] %vm842, %v1186
      %1266 = vst.msk [vmem:[%s1237 + $0x1c0] sm:$0xff] %vm842, %v1191
      %1267 = vst.msk [vmem:[%s1237 + $0x1c8] sm:$0xff] %vm842, %v1194
      %1268 = vst.msk [vmem:[%s1237 + $0x1e0] sm:$0xff] %vm842, %v1199
      %1269 = vst.msk [vmem:[%s1237 + $0x1e8] sm:$0xff] %vm842, %v1202
      %v1270 = vsel %vm842, %v910, 0.0
      %v1271 = vsel %vm842, %v913, 0.0
      %v1272 = vadd.f32 %v1270, %v1271
      %v1273 = vsel %vm842, %v918, 0.0
      %v1274 = vadd.f32 %v1272, %v1273
      %v1275 = vsel %vm842, %v921, 0.0
      %v1276 = vadd.f32 %v1274, %v1275
      %v1277 = vsel %vm842, %v926, 0.0
      %v1278 = vadd.f32 %v1276, %v1277
      %v1279 = vsel %vm842, %v929, 0.0
      %v1280 = vadd.f32 %v1278, %v1279
      %v1281 = vsel %vm842, %v934, 0.0
      %v1282 = vadd.f32 %v1280, %v1281
      %v1283 = vsel %vm842, %v937, 0.0
      %v1284 = vadd.f32 %v1282, %v1283
      %v1285 = vsel %vm842, %v942, 0.0
      %v1286 = vadd.f32 %v1284, %v1285
      %v1287 = vsel %vm842, %v945, 0.0
      %v1288 = vadd.f32 %v1286, %v1287
      %v1289 = vsel %vm842, %v950, 0.0
      %v1290 = vadd.f32 %v1288, %v1289
      %v1291 = vsel %vm842, %v953, 0.0
      %v1292 = vadd.f32 %v1290, %v1291
      %v1293 = vsel %vm842, %v958, 0.0
      %v1294 = vadd.f32 %v1292, %v1293
      %v1295 = vsel %vm842, %v961, 0.0
      %v1296 = vadd.f32 %v1294, %v1295
      %v1297 = vsel %vm842, %v966, 0.0
      %v1298 = vadd.f32 %v1296, %v1297
      %v1299 = vsel %vm842, %v969, 0.0
      %v1300 = vadd.f32 %v1298, %v1299
      %v1301 = vsel %vm842, %v974, 0.0
      %v1302 = vadd.f32 %v1300, %v1301
      %v1303 = vsel %vm842, %v977, 0.0
      %v1304 = vadd.f32 %v1302, %v1303
      %v1305 = vsel %vm842, %v982, 0.0
      %v1306 = vadd.f32 %v1304, %v1305
      %v1307 = vsel %vm842, %v985, 0.0
      %v1308 = vadd.f32 %v1306, %v1307
      %v1309 = vsel %vm842, %v990, 0.0
      %v1310 = vadd.f32 %v1308, %v1309
      %v1311 = vsel %vm842, %v993, 0.0
      %v1312 = vadd.f32 %v1310, %v1311
      %v1313 = vsel %vm842, %v998, 0.0
      %v1314 = vadd.f32 %v1312, %v1313
      %v1315 = vsel %vm842, %v1001, 0.0
      %v1316 = vadd.f32 %v1314, %v1315
      %v1317 = vsel %vm842, %v1006, 0.0
      %v1318 = vadd.f32 %v1316, %v1317
      %v1319 = vsel %vm842, %v1009, 0.0
      %v1320 = vadd.f32 %v1318, %v1319
      %v1321 = vsel %vm842, %v1014, 0.0
      %v1322 = vadd.f32 %v1320, %v1321
      %v1323 = vsel %vm842, %v1017, 0.0
      %v1324 = vadd.f32 %v1322, %v1323
      %v1325 = vsel %vm842, %v1022, 0.0
      %v1326 = vadd.f32 %v1324, %v1325
      %v1327 = vsel %vm842, %v1025, 0.0
      %v1328 = vadd.f32 %v1326, %v1327
      %v1329 = vsel %vm842, %v1030, 0.0
      %v1330 = vadd.f32 %v1328, %v1329
      %v1331 = vsel %vm842, %v1033, 0.0
      %v1332 = vadd.f32 %v1330, %v1331
      %v1333 = vrot.slane %v1332, 4
      %v1334 = vadd.f32 %v1332, %v1333
      %v1335 = vrot.slane %v1334, 2
      %v1336 = vadd.f32 %v1334, %v1335
      %v1337 = vrot.slane %v1336, 1
      %v1338 = vadd.f32 %v1336, %v1337
      %v1339 = vsel %vm842, %v1079, 0.0
      %v1340 = vsel %vm842, %v1082, 0.0
      %v1341 = vadd.f32 %v1339, %v1340
      %v1342 = vsel %vm842, %v1087, 0.0
      %v1343 = vadd.f32 %v1341, %v1342
      %v1344 = vsel %vm842, %v1090, 0.0
      %v1345 = vadd.f32 %v1343, %v1344
      %v1346 = vsel %vm842, %v1095, 0.0
      %v1347 = vadd.f32 %v1345, %v1346
      %v1348 = vsel %vm842, %v1098, 0.0
      %v1349 = vadd.f32 %v1347, %v1348
      %v1350 = vsel %vm842, %v1103, 0.0
      %v1351 = vadd.f32 %v1349, %v1350
      %v1352 = vsel %vm842, %v1106, 0.0
      %v1353 = vadd.f32 %v1351, %v1352
      %v1354 = vsel %vm842, %v1111, 0.0
      %v1355 = vadd.f32 %v1353, %v1354
      %v1356 = vsel %vm842, %v1114, 0.0
      %v1357 = vadd.f32 %v1355, %v1356
      %v1358 = vsel %vm842, %v1119, 0.0
      %v1359 = vadd.f32 %v1357, %v1358
      %v1360 = vsel %vm842, %v1122, 0.0
      %v1361 = vadd.f32 %v1359, %v1360
      %v1362 = vsel %vm842, %v1127, 0.0
      %v1363 = vadd.f32 %v1361, %v1362
      %v1364 = vsel %vm842, %v1130, 0.0
      %v1365 = vadd.f32 %v1363, %v1364
      %v1366 = vsel %vm842, %v1135, 0.0
      %v1367 = vadd.f32 %v1365, %v1366
      %v1368 = vsel %vm842, %v1138, 0.0
      %v1369 = vadd.f32 %v1367, %v1368
      %v1370 = vsel %vm842, %v1143, 0.0
      %v1371 = vadd.f32 %v1369, %v1370
      %v1372 = vsel %vm842, %v1146, 0.0
      %v1373 = vadd.f32 %v1371, %v1372
      %v1374 = vsel %vm842, %v1151, 0.0
      %v1375 = vadd.f32 %v1373, %v1374
      %v1376 = vsel %vm842, %v1154, 0.0
      %v1377 = vadd.f32 %v1375, %v1376
      %v1378 = vsel %vm842, %v1159, 0.0
      %v1379 = vadd.f32 %v1377, %v1378
      %v1380 = vsel %vm842, %v1162, 0.0
      %v1381 = vadd.f32 %v1379, %v1380
      %v1382 = vsel %vm842, %v1167, 0.0
      %v1383 = vadd.f32 %v1381, %v1382
      %v1384 = vsel %vm842, %v1170, 0.0
      %v1385 = vadd.f32 %v1383, %v1384
      %v1386 = vsel %vm842, %v1175, 0.0
      %v1387 = vadd.f32 %v1385, %v1386
      %v1388 = vsel %vm842, %v1178, 0.0
      %v1389 = vadd.f32 %v1387, %v1388
      %v1390 = vsel %vm842, %v1183, 0.0
      %v1391 = vadd.f32 %v1389, %v1390
      %v1392 = vsel %vm842, %v1186, 0.0
      %v1393 = vadd.f32 %v1391, %v1392
      %v1394 = vsel %vm842, %v1191, 0.0
      %v1395 = vadd.f32 %v1393, %v1394
      %v1396 = vsel %vm842, %v1194, 0.0
      %v1397 = vadd.f32 %v1395, %v1396
      %v1398 = vsel %vm842, %v1199, 0.0
      %v1399 = vadd.f32 %v1397, %v1398
      %v1400 = vsel %vm842, %v1202, 0.0
      %v1401 = vadd.f32 %v1399, %v1400
      %v1402 = vrot.slane %v1401, 4
      %v1403 = vadd.f32 %v1401, %v1402
      %v1404 = vrot.slane %v1403, 2
      %v1405 = vadd.f32 %v1403, %v1404
      %v1406 = vrot.slane %v1405, 1
      %v1407 = vadd.f32 %v1405, %v1406
      %v1408 = vadd.f32 %v1338, %v1407
      %v1409 = vmul.f32 %v910, %v910
      %v1410 = vmul.f32 %v913, %v913
      %v1411 = vmul.f32 %v918, %v918
      %v1412 = vmul.f32 %v921, %v921
      %v1413 = vmul.f32 %v926, %v926
      %v1414 = vmul.f32 %v929, %v929
      %v1415 = vmul.f32 %v934, %v934
      %v1416 = vmul.f32 %v937, %v937
      %v1417 = vmul.f32 %v942, %v942
      %v1418 = vmul.f32 %v945, %v945
      %v1419 = vmul.f32 %v950, %v950
      %v1420 = vmul.f32 %v953, %v953
      %v1421 = vmul.f32 %v958, %v958
      %v1422 = vmul.f32 %v961, %v961
      %v1423 = vmul.f32 %v966, %v966
      %v1424 = vmul.f32 %v969, %v969
      %v1425 = vmul.f32 %v974, %v974
      %v1426 = vmul.f32 %v977, %v977
      %v1427 = vmul.f32 %v982, %v982
      %v1428 = vmul.f32 %v985, %v985
      %v1429 = vmul.f32 %v990, %v990
      %v1430 = vmul.f32 %v993, %v993
      %v1431 = vmul.f32 %v998, %v998
      %v1432 = vmul.f32 %v1001, %v1001
      %v1433 = vmul.f32 %v1006, %v1006
      %v1434 = vmul.f32 %v1009, %v1009
      %v1435 = vmul.f32 %v1014, %v1014
      %v1436 = vmul.f32 %v1017, %v1017
      %v1437 = vmul.f32 %v1022, %v1022
      %v1438 = vmul.f32 %v1025, %v1025
      %v1439 = vmul.f32 %v1030, %v1030
      %v1440 = vmul.f32 %v1033, %v1033
      %v1441 = vsel %vm842, %v1409, 0.0
      %v1442 = vsel %vm842, %v1410, 0.0
      %v1443 = vadd.f32 %v1441, %v1442
      %v1444 = vsel %vm842, %v1411, 0.0
      %v1445 = vadd.f32 %v1443, %v1444
      %v1446 = vsel %vm842, %v1412, 0.0
      %v1447 = vadd.f32 %v1445, %v1446
      %v1448 = vsel %vm842, %v1413, 0.0
      %v1449 = vadd.f32 %v1447, %v1448
      %v1450 = vsel %vm842, %v1414, 0.0
      %v1451 = vadd.f32 %v1449, %v1450
      %v1452 = vsel %vm842, %v1415, 0.0
      %v1453 = vadd.f32 %v1451, %v1452
      %v1454 = vsel %vm842, %v1416, 0.0
      %v1455 = vadd.f32 %v1453, %v1454
      %v1456 = vsel %vm842, %v1417, 0.0
      %v1457 = vadd.f32 %v1455, %v1456
      %v1458 = vsel %vm842, %v1418, 0.0
      %v1459 = vadd.f32 %v1457, %v1458
      %v1460 = vsel %vm842, %v1419, 0.0
      %v1461 = vadd.f32 %v1459, %v1460
      %v1462 = vsel %vm842, %v1420, 0.0
      %v1463 = vadd.f32 %v1461, %v1462
      %v1464 = vsel %vm842, %v1421, 0.0
      %v1465 = vadd.f32 %v1463, %v1464
      %v1466 = vsel %vm842, %v1422, 0.0
      %v1467 = vadd.f32 %v1465, %v1466
      %v1468 = vsel %vm842, %v1423, 0.0
      %v1469 = vadd.f32 %v1467, %v1468
      %v1470 = vsel %vm842, %v1424, 0.0
      %v1471 = vadd.f32 %v1469, %v1470
      %v1472 = vsel %vm842, %v1425, 0.0
      %v1473 = vadd.f32 %v1471, %v1472
      %v1474 = vsel %vm842, %v1426, 0.0
      %v1475 = vadd.f32 %v1473, %v1474
      %v1476 = vsel %vm842, %v1427, 0.0
      %v1477 = vadd.f32 %v1475, %v1476
      %v1478 = vsel %vm842, %v1428, 0.0
      %v1479 = vadd.f32 %v1477, %v1478
      %v1480 = vsel %vm842, %v1429, 0.0
      %v1481 = vadd.f32 %v1479, %v1480
      %v1482 = vsel %vm842, %v1430, 0.0
      %v1483 = vadd.f32 %v1481, %v1482
      %v1484 = vsel %vm842, %v1431, 0.0
      %v1485 = vadd.f32 %v1483, %v1484
      %v1486 = vsel %vm842, %v1432, 0.0
      %v1487 = vadd.f32 %v1485, %v1486
      %v1488 = vsel %vm842, %v1433, 0.0
      %v1489 = vadd.f32 %v1487, %v1488
      %v1490 = vsel %vm842, %v1434, 0.0
      %v1491 = vadd.f32 %v1489, %v1490
      %v1492 = vsel %vm842, %v1435, 0.0
      %v1493 = vadd.f32 %v1491, %v1492
      %v1494 = vsel %vm842, %v1436, 0.0
      %v1495 = vadd.f32 %v1493, %v1494
      %v1496 = vsel %vm842, %v1437, 0.0
      %v1497 = vadd.f32 %v1495, %v1496
      %v1498 = vsel %vm842, %v1438, 0.0
      %v1499 = vadd.f32 %v1497, %v1498
      %v1500 = vsel %vm842, %v1439, 0.0
      %v1501 = vadd.f32 %v1499, %v1500
      %v1502 = vsel %vm842, %v1440, 0.0
      %v1503 = vadd.f32 %v1501, %v1502
      %v1504 = vrot.slane %v1503, 4
      %v1505 = vadd.f32 %v1503, %v1504
      %v1506 = vrot.slane %v1505, 2
      %v1507 = vadd.f32 %v1505, %v1506
      %v1508 = vrot.slane %v1507, 1
      %v1509 = vadd.f32 %v1507, %v1508
      %v1510 = vmul.f32 %v1079, %v1079
      %v1511 = vmul.f32 %v1082, %v1082
      %v1512 = vmul.f32 %v1087, %v1087
      %v1513 = vmul.f32 %v1090, %v1090
      %v1514 = vmul.f32 %v1095, %v1095
      %v1515 = vmul.f32 %v1098, %v1098
      %v1516 = vmul.f32 %v1103, %v1103
      %v1517 = vmul.f32 %v1106, %v1106
      %v1518 = vmul.f32 %v1111, %v1111
      %v1519 = vmul.f32 %v1114, %v1114
      %v1520 = vmul.f32 %v1119, %v1119
      %v1521 = vmul.f32 %v1122, %v1122
      %v1522 = vmul.f32 %v1127, %v1127
      %v1523 = vmul.f32 %v1130, %v1130
      %v1524 = vmul.f32 %v1135, %v1135
      %v1525 = vmul.f32 %v1138, %v1138
      %v1526 = vmul.f32 %v1143, %v1143
      %v1527 = vmul.f32 %v1146, %v1146
      %v1528 = vmul.f32 %v1151, %v1151
      %v1529 = vmul.f32 %v1154, %v1154
      %v1530 = vmul.f32 %v1159, %v1159
      %v1531 = vmul.f32 %v1162, %v1162
      %v1532 = vmul.f32 %v1167, %v1167
      %v1533 = vmul.f32 %v1170, %v1170
      %v1534 = vmul.f32 %v1175, %v1175
      %v1535 = vmul.f32 %v1178, %v1178
      %v1536 = vmul.f32 %v1183, %v1183
      %v1537 = vmul.f32 %v1186, %v1186
      %v1538 = vmul.f32 %v1191, %v1191
      %v1539 = vmul.f32 %v1194, %v1194
      %v1540 = vmul.f32 %v1199, %v1199
      %v1541 = vmul.f32 %v1202, %v1202
      %v1542 = vsel %vm842, %v1510, 0.0
      %v1543 = vsel %vm842, %v1511, 0.0
      %v1544 = vadd.f32 %v1542, %v1543
      %v1545 = vsel %vm842, %v1512, 0.0
      %v1546 = vadd.f32 %v1544, %v1545
      %v1547 = vsel %vm842, %v1513, 0.0
      %v1548 = vadd.f32 %v1546, %v1547
      %v1549 = vsel %vm842, %v1514, 0.0
      %v1550 = vadd.f32 %v1548, %v1549
      %v1551 = vsel %vm842, %v1515, 0.0
      %v1552 = vadd.f32 %v1550, %v1551
      %v1553 = vsel %vm842, %v1516, 0.0
      %v1554 = vadd.f32 %v1552, %v1553
      %v1555 = vsel %vm842, %v1517, 0.0
      %v1556 = vadd.f32 %v1554, %v1555
      %v1557 = vsel %vm842, %v1518, 0.0
      %v1558 = vadd.f32 %v1556, %v1557
      %v1559 = vsel %vm842, %v1519, 0.0
      %v1560 = vadd.f32 %v1558, %v1559
      %v1561 = vsel %vm842, %v1520, 0.0
      %v1562 = vadd.f32 %v1560, %v1561
      %v1563 = vsel %vm842, %v1521, 0.0
      %v1564 = vadd.f32 %v1562, %v1563
      %v1565 = vsel %vm842, %v1522, 0.0
      %v1566 = vadd.f32 %v1564, %v1565
      %v1567 = vsel %vm842, %v1523, 0.0
      %v1568 = vadd.f32 %v1566, %v1567
      %v1569 = vsel %vm842, %v1524, 0.0
      %v1570 = vadd.f32 %v1568, %v1569
      %v1571 = vsel %vm842, %v1525, 0.0
      %v1572 = vadd.f32 %v1570, %v1571
      %v1573 = vsel %vm842, %v1526, 0.0
      %v1574 = vadd.f32 %v1572, %v1573
      %v1575 = vsel %vm842, %v1527, 0.0
      %v1576 = vadd.f32 %v1574, %v1575
      %v1577 = vsel %vm842, %v1528, 0.0
      %v1578 = vadd.f32 %v1576, %v1577
      %v1579 = vsel %vm842, %v1529, 0.0
      %v1580 = vadd.f32 %v1578, %v1579
      %v1581 = vsel %vm842, %v1530, 0.0
      %v1582 = vadd.f32 %v1580, %v1581
      %v1583 = vsel %vm842, %v1531, 0.0
      %v1584 = vadd.f32 %v1582, %v1583
      %v1585 = vsel %vm842, %v1532, 0.0
      %v1586 = vadd.f32 %v1584, %v1585
      %v1587 = vsel %vm842, %v1533, 0.0
      %v1588 = vadd.f32 %v1586, %v1587
      %v1589 = vsel %vm842, %v1534, 0.0
      %v1590 = vadd.f32 %v1588, %v1589
      %v1591 = vsel %vm842, %v1535, 0.0
      %v1592 = vadd.f32 %v1590, %v1591
      %v1593 = vsel %vm842, %v1536, 0.0
      %v1594 = vadd.f32 %v1592, %v1593
      %v1595 = vsel %vm842, %v1537, 0.0
      %v1596 = vadd.f32 %v1594, %v1595
      %v1597 = vsel %vm842, %v1538, 0.0
      %v1598 = vadd.f32 %v1596, %v1597
      %v1599 = vsel %vm842, %v1539, 0.0
      %v1600 = vadd.f32 %v1598, %v1599
      %v1601 = vsel %vm842, %v1540, 0.0
      %v1602 = vadd.f32 %v1600, %v1601
      %v1603 = vsel %vm842, %v1541, 0.0
      %v1604 = vadd.f32 %v1602, %v1603
      %v1605 = vrot.slane %v1604, 4
      %v1606 = vadd.f32 %v1604, %v1605
      %v1607 = vrot.slane %v1606, 2
      %v1608 = vadd.f32 %v1606, %v1607
      %v1609 = vrot.slane %v1608, 1
      %v1610 = vadd.f32 %v1608, %v1609
      %v1611 = vadd.f32 %v1509, %v1610
      %1613 = vrot.lane.b32.xlu0 %v1408, 120
      %v1614 = vpop.permute.xlu0 %1613
      %v1616 = vadd.f32 %v1408, %v1614
      %vm1617 = vcmask 57344
      %1618 = vst.msk [vmem:[%s241] sm:$0x1] %vm1617, %v1616
      %1620 = vrot.lane.b32.xlu0 %v1611, 120
      %v1621 = vpop.permute.xlu0 %1620
      %v1623 = vadd.f32 %v1611, %v1621
      %1624 = vst.msk [vmem:[%s241 + $0x1] sm:$0x1] %vm1617, %v1623
      %s1625 = smul.u32 16, %s21
      %p1626 = scmp.lt.s32.totalorder %s20, 1
      %s1627 = scalar_select %p1626, %s20, 1
      %p1628 = scmp.lt.s32.totalorder %s1625, 15
      %s1629 = scalar_select %p1628, %s1625, 15
      %s1630 = smul.addr %s1629, 4
      %s1631 = smul.addr %s1627, 64
      %s1632 = sadd.s32 %s1630, %s1631
      %s1633 = smul.addr %s1632, 8
      %s1634 = scalar_lea.vmem %s3, %s1633
      %p1635 = scmp.lt.s32.totalorder %s20, 1
      %s1636 = scalar_select %p1635, %s20, 1
      %p1637 = scmp.lt.s32.totalorder %s21, 0
      %s1638 = scalar_select %p1637, %s21, 0
      %s1639 = sadd.s32 %s1638, %s1636
      %s1640 = smul.addr %s1639, 2
      %s1641 = scalar_lea.vmem %s4, %s1640
      // Predicated region
      $region33: #{upconv_forward.2} parent=31 // pred_check
        %p1642 = pneg %p116
      $region34: #{upconv_forward.2} parent=31 // pred_check_branch
        %1644 = sbr.rel (%p1642) target = $region36
      $region35: #{upconv_forward.2} parent=31 // pred_region
        %s1645 = smul.u32 16, %s21
      $region36: #{upconv_forward.2} parent=31 // pred_fallthru
        _
      // Predicated region
      $region37: #{upconv_forward.2} parent=31 // pred_check
        %p1646 = pneg %p144
      $region38: #{upconv_forward.2} parent=31 // pred_check_branch
        %1648 = sbr.rel (%p1646) target = $region40
      $region39: #{upconv_forward.2} parent=31 // pred_region
        _
      $region40: #{upconv_forward.2} parent=31 // pred_fallthru
        _
    $region32: #{upconv_forward.2} parent=5 // pred_fallthru
      _
    %p1649 = scmp.le.s32.totalorder 2, %s11
    // Predicated region
    $region41: #{upconv_forward.2} parent=5 // pred_check
      %p1650 = pneg %p1649
    $region42: #{upconv_forward.2} parent=5 // pred_check_branch
      %1652 = sbr.rel (%p1650) target = $region44
    $region43: #{upconv_forward.2} parent=5 // pred_region
      %s1653 = ssub.s32 %s11, 2
      // Predicated region
      $region45: #{upconv_forward.2} parent=43 // pred_check
        %p1654 = pneg %p122
      $region46: #{upconv_forward.2} parent=43 // pred_check_branch
        %1656 = sbr.rel (%p1654) target = $region48
      $region47: #{upconv_forward.2} parent=43 // pred_region
        %s1657 = smul.u32 16, %s23
        %p1658 = scmp.lt.s32.totalorder %s22, 1
        %s1659 = scalar_select %p1658, %s22, 1
        %p1660 = scmp.lt.s32.totalorder %s1657, 15
        %s1661 = scalar_select %p1660, %s1657, 15
        %s1662 = smul.addr %s1661, 4
        %s1663 = smul.addr %s1659, 64
        %s1664 = sadd.s32 %s1662, %s1663
        %s1665 = smul.addr %s1664, 8
        %s1666 = scalar_lea.vmem %s3, %s1665
      $region48: #{upconv_forward.2} parent=43 // pred_fallthru
        _
      // Predicated region
      $region49: #{upconv_forward.2} parent=43 // pred_check
        %p1667 = pneg %p150
      $region50: #{upconv_forward.2} parent=43 // pred_check_branch
        %1669 = sbr.rel (%p1667) target = $region52
      $region51: #{upconv_forward.2} parent=43 // pred_region
        %p1670 = scmp.lt.s32.totalorder %s22, 1
        %s1671 = scalar_select %p1670, %s22, 1
        %p1672 = scmp.lt.s32.totalorder %s23, 0
        %s1673 = scalar_select %p1672, %s23, 0
        %s1674 = sadd.s32 %s1673, %s1671
        %s1675 = smul.addr %s1674, 2
        %s1676 = scalar_lea.vmem %s4, %s1675
      $region52: #{upconv_forward.2} parent=43 // pred_fallthru
        _
    $region44: #{upconv_forward.2} parent=5 // pred_fallthru
      _
  $region6: #{upconv_forward.2} parent=0 // loop_footer
    %s15 = sadd.s32 1, %s11
  $region7: #{upconv_forward.2} parent=0 // loop_footer_branch
    %10 = sbr.rel target = $region3
  $region8: #{upconv_forward.2} parent=0 // loop_exit
    _

</llo_original>
